<compile_context>
chip_gen: v5e
topology: v5e:2x2
jax: 0.10.0
libtpu: 0.0.40
codegen_flags: <defaults>
</compile_context>

<pallas_src>
import functools
import math

import jax
import jax.numpy as jnp
from jax.experimental import pallas as pl
from jax.experimental.pallas import tpu as pltpu


# --------------------------- tiling helpers --------------------------------

def _pick_tile(dim, target, align):
    """Largest tile <= target that divides dim and is a multiple of align,
    falling back to the full dim (always a legal block)."""
    if dim <= target:
        return dim
    t = (target // align) * align
    while t >= align:
        if dim % t == 0:
            return t
        t -= align
    return dim


# ------------------------ fused LayerNorm + matmul --------------------------

def _ln_matmul_kernel(x_ref, g_ref, bln_ref, w_ref, b_ref, o_ref, *, relu, eps):
    x = x_ref[...]                                    # (tm, K), K = full emb dim
    mu = jnp.mean(x, axis=-1, keepdims=True)
    var = jnp.mean(jnp.square(x - mu), axis=-1, keepdims=True)
    xn = (x - mu) * jax.lax.rsqrt(var + eps)
    xn = xn * g_ref[...] + bln_ref[...]
    y = jnp.dot(xn, w_ref[...], preferred_element_type=jnp.float32) + b_ref[...]
    if relu:
        y = jnp.maximum(y, 0.0)
    o_ref[...] = y


def ln_linear(x, gamma, beta, w, bias, relu=False, tm=256, tn=256):
    """LayerNorm(x) @ w + bias (optionally ReLU).  x:(M,K), w:(K,N) -> (M,N).
    K (emb_dim) is kept untiled so LN statistics stay exact."""
    M, K = x.shape
    _, N = w.shape
    tm = _pick_tile(M, tm, 8)
    tn = _pick_tile(N, tn, 128)
    nm, nn = M // tm, N // tn
    return pl.pallas_call(
        functools.partial(_ln_matmul_kernel, relu=relu, eps=1e-5),
        out_shape=jax.ShapeDtypeStruct((M, N), jnp.float32),
        grid=(nm, nn),
        in_specs=[
            pl.BlockSpec((tm, K), lambda i, j: (i, 0)),
            pl.BlockSpec((1, K), lambda i, j: (0, 0)),
            pl.BlockSpec((1, K), lambda i, j: (0, 0)),
            pl.BlockSpec((K, tn), lambda i, j: (0, j)),
            pl.BlockSpec((1, tn), lambda i, j: (0, j)),
        ],
        out_specs=pl.BlockSpec((tm, tn), lambda i, j: (i, j)),
        compiler_params=pltpu.CompilerParams(
            dimension_semantics=("parallel", "parallel")),
    )(x, gamma.reshape(1, K), beta.reshape(1, K), w, bias.reshape(1, N))


# ----------------------- tiled matmul (K reduction) --------------------------

def _matmul_kernel(*refs, relu, has_bias, has_res):
    x_ref, w_ref = refs[0], refs[1]
    idx = 2
    b_ref = None
    res_ref = None
    if has_bias:
        b_ref = refs[idx]; idx += 1
    if has_res:
        res_ref = refs[idx]; idx += 1
    o_ref, acc_ref = refs[idx], refs[idx + 1]

    k = pl.program_id(2)

    @pl.when(k == 0)
    def _():
        acc_ref[...] = jnp.zeros_like(acc_ref)

    acc_ref[...] += jnp.dot(x_ref[...], w_ref[...],
                            preferred_element_type=jnp.float32)

    @pl.when(k == pl.num_programs(2) - 1)
    def _():
        y = acc_ref[...]
        if has_bias:
            y = y + b_ref[...]
        if has_res:
            y = y + res_ref[...]
        if relu:
            y = jnp.maximum(y, 0.0)
        o_ref[...] = y


def linear(x, w, bias=None, residual=None, relu=False, tm=256, tn=256, tk=512):
    """x:(M,K) @ w:(K,N) [+ bias] [+ residual] [ReLU] -> (M,N), f32."""
    M, K = x.shape
    _, N = w.shape
    tm = _pick_tile(M, tm, 8)
    tn = _pick_tile(N, tn, 128)
    tk = _pick_tile(K, tk, 128)
    nm, nn, nk = M // tm, N // tn, K // tk

    in_specs = [
        pl.BlockSpec((tm, tk), lambda i, j, k: (i, k)),
        pl.BlockSpec((tk, tn), lambda i, j, k: (k, j)),
    ]
    args = [x, w]
    if bias is not None:
        in_specs.append(pl.BlockSpec((1, tn), lambda i, j, k: (0, j)))
        args.append(bias.reshape(1, N))
    if residual is not None:
        in_specs.append(pl.BlockSpec((tm, tn), lambda i, j, k: (i, j)))
        args.append(residual)

    return pl.pallas_call(
        functools.partial(_matmul_kernel, relu=relu,
                          has_bias=bias is not None,
                          has_res=residual is not None),
        out_shape=jax.ShapeDtypeStruct((M, N), jnp.float32),
        grid=(nm, nn, nk),
        in_specs=in_specs,
        out_specs=pl.BlockSpec((tm, tn), lambda i, j, k: (i, j)),
        scratch_shapes=[pltpu.VMEM((tm, tn), jnp.float32)],
        compiler_params=pltpu.CompilerParams(
            dimension_semantics=("parallel", "parallel", "arbitrary")),
    )(*args)


# ----------- fused causal multi-head attention + out-proj + residual --------

def _attn_kernel(qkv_ref, wo_ref, bo_ref, res_ref, o_ref, ctx_ref,
                 *, num_heads, head_dim, scale):
    S = qkv_ref.shape[1]
    E = num_heads * head_dim
    qkv = qkv_ref[0]                                        # (S, 3E)

    row = jax.lax.broadcasted_iota(jnp.int32, (S, S), 0)
    col = jax.lax.broadcasted_iota(jnp.int32, (S, S), 1)
    causal = col <= row

    for h in range(num_heads):                              # static head loop
        q = qkv[:, h * head_dim:(h + 1) * head_dim]
        k = qkv[:, E + h * head_dim:E + (h + 1) * head_dim]
        v = qkv[:, 2 * E + h * head_dim:2 * E + (h + 1) * head_dim]
        s = jax.lax.dot_general(q, k, (((1,), (1,)), ((), ())),
                                preferred_element_type=jnp.float32) * scale
        s = jnp.where(causal, s, -1e30)
        m = jnp.max(s, axis=-1, keepdims=True)
        p = jnp.exp(s - m)
        p = p / jnp.sum(p, axis=-1, keepdims=True)
        ctx_ref[:, h * head_dim:(h + 1) * head_dim] = jnp.dot(
            p, v, preferred_element_type=jnp.float32)

    y = jnp.dot(ctx_ref[...], wo_ref[...], preferred_element_type=jnp.float32)
    o_ref[0] = y + bo_ref[...] + res_ref[0]


def attention_residual(qkv, wo, bo, x_res, num_heads):
    """qkv:(B,S,3E) packed, wo:(E,E), bo:(E,), x_res:(B,S,E) -> (B,S,E)."""
    B, S, E3 = qkv.shape
    E = E3 // 3
    head_dim = E // num_heads
    scale = 1.0 / math.sqrt(head_dim)
    return pl.pallas_call(
        functools.partial(_attn_kernel, num_heads=num_heads,
                          head_dim=head_dim, scale=scale),
        out_shape=jax.ShapeDtypeStruct((B, S, E), jnp.float32),
        grid=(B,),
        in_specs=[
            pl.BlockSpec((1, S, E3), lambda b: (b, 0, 0)),
            pl.BlockSpec((E, E), lambda b: (0, 0)),
            pl.BlockSpec((1, E), lambda b: (0, 0)),
            pl.BlockSpec((1, S, E), lambda b: (b, 0, 0)),
        ],
        out_specs=pl.BlockSpec((1, S, E), lambda b: (b, 0, 0)),
        scratch_shapes=[pltpu.VMEM((S, E), jnp.float32)],
        compiler_params=pltpu.CompilerParams(dimension_semantics=("parallel",)),
    )(qkv, wo, bo.reshape(1, E), x_res)


# ------------------------------ Model (glue) -------------------------------

def sinusoidal_pos_encoding(context_length, emb_dim):
    pos = jnp.arange(context_length, dtype=jnp.float32)[:, None]
    i = jnp.arange(0, emb_dim, 2, dtype=jnp.float32)
    div = jnp.exp(-jnp.log(10000.0) * i / emb_dim)
    pe = jnp.zeros((context_length, emb_dim), jnp.float32)
    pe = pe.at[:, 0::2].set(jnp.sin(pos * div))
    pe = pe.at[:, 1::2].set(jnp.cos(pos * div))
    return pe


def init_params(key, vocab_size, num_blocks, emb_dim, dim_ff, num_heads):
    del num_heads
    k_emb, k_out, k_blocks = jax.random.split(key, 3)
    scale = 0.02

    def w(k, shape):
        return scale * jax.random.normal(k, shape, jnp.float32)

    params = {
        "embedding": w(k_emb, (vocab_size, emb_dim)),
        "out_proj": w(k_out, (emb_dim, vocab_size)),   # Linear(emb, vocab, bias=False)
        "blocks": [],
    }
    for bk in jax.random.split(k_blocks, num_blocks):
        ks = jax.random.split(bk, 4)
        blk = {
            # fused QKV projection weight (E, 3E)
            "wqkv": w(ks[0], (emb_dim, 3 * emb_dim)),
            "bqkv": jnp.zeros((3 * emb_dim,), jnp.float32),
            "wo": w(ks[1], (emb_dim, emb_dim)), "bo": jnp.zeros((emb_dim,), jnp.float32),
            "w1": w(ks[2], (emb_dim, dim_ff)),  "b1": jnp.zeros((dim_ff,), jnp.float32),
            "w2": w(ks[3], (dim_ff, emb_dim)),  "b2": jnp.zeros((emb_dim,), jnp.float32),
            "ln1_g": jnp.ones((emb_dim,), jnp.float32), "ln1_b": jnp.zeros((emb_dim,), jnp.float32),
            "ln2_g": jnp.ones((emb_dim,), jnp.float32), "ln2_b": jnp.zeros((emb_dim,), jnp.float32),
        }
        params["blocks"].append(blk)
    return params


def transformer_block(x, p, num_heads):
    B, S, E = x.shape
    xf = x.reshape(B * S, E)

    # --- pre-LN causal multi-head self-attention (fused) ---
    qkv = ln_linear(xf, p["ln1_g"], p["ln1_b"], p["wqkv"], p["bqkv"])   # (B*S, 3E)
    x = attention_residual(qkv.reshape(B, S, 3 * E), p["wo"], p["bo"], x, num_heads)

    # --- pre-LN feed-forward (ReLU), residual fused into second matmul ---
    xf = x.reshape(B * S, E)
    h = ln_linear(xf, p["ln2_g"], p["ln2_b"], p["w1"], p["b1"], relu=True)
    x = linear(h, p["w2"], bias=p["b2"], residual=xf).reshape(B, S, E)
    return x


def transformer_forward(params, tokens, *, num_heads, context_length, seq_length=None):
    B, S = tokens.shape
    if seq_length is None:
        seq_length = S
    E = params["embedding"].shape[1]
    V = params["out_proj"].shape[1]

    # embedding lookup (JAX glue) + sinusoidal positional encoding (JAX glue)
    x = jnp.take(params["embedding"], tokens, axis=0)          # (B, S, E)
    pe = sinusoidal_pos_encoding(context_length, E)
    x = x + pe[:seq_length][None, :, :]

    for blk in params["blocks"]:
        x = transformer_block(x, blk, num_heads)

    # final vocab projection: bias-free, N-tiled Pallas matmul
    logits = linear(x.reshape(B * S, E), params["out_proj"])
    return logits.reshape(B, S, V)


# --------------------------------- main -------------------------------------

if __name__ == "__main__":
    vocab_size = 64
    num_blocks = 2
    emb_dim = 32
    dim_ff = 64
    num_heads = 4
    context_length = 16
    batch = 2
    seq = 8

    key = jax.random.PRNGKey(0)
    k_params, k_tokens = jax.random.split(key)
    params = init_params(k_params, vocab_size, num_blocks, emb_dim, dim_ff, num_heads)
    tokens = jax.random.randint(k_tokens, (batch, seq), 0, vocab_size, dtype=jnp.int32)

    fwd = jax.jit(functools.partial(transformer_forward,
                                    num_heads=num_heads,
                                    context_length=context_length))
    logits = fwd(params, tokens)
    jax.block_until_ready(logits)

    assert logits.shape == (batch, seq, vocab_size)
    assert logits.dtype == jnp.float32
    assert bool(jnp.all(jnp.isfinite(logits)))
    print("KERNEL_OK")
</pallas_src>

<mosaic_0001>
module attributes {stable_mosaic.version = 11 : i64} {
  func.func @_ln_matmul_kernel(%arg0: i32, %arg1: i32, %arg2: memref<16x32xf32, #tpu.memory_space<vmem>>, %arg3: memref<1x32xf32, #tpu.memory_space<vmem>>, %arg4: memref<1x32xf32, #tpu.memory_space<vmem>>, %arg5: memref<32x96xf32, #tpu.memory_space<vmem>>, %arg6: memref<1x96xf32, #tpu.memory_space<vmem>>, %arg7: memref<16x96xf32, #tpu.memory_space<vmem>>) attributes {dimension_semantics = [#tpu.dimension_semantics<parallel>, #tpu.dimension_semantics<parallel>], iteration_bounds = array<i64: 1, 1>, scalar_prefetch = 0 : i64, scratch_operands = 0 : i64, tpu.core_type = #tpu.core_type<tc>, window_params = [{transform_indices = @transform_0, window_bounds = array<i64: 16, 32>}, {pipeline_mode = #tpu.pipeline_mode<synchronous>, transform_indices = @transform_1, window_bounds = array<i64: 1, 32>}, {pipeline_mode = #tpu.pipeline_mode<synchronous>, transform_indices = @transform_2, window_bounds = array<i64: 1, 32>}, {transform_indices = @transform_3, window_bounds = array<i64: 32, 96>}, {transform_indices = @transform_4, window_bounds = array<i64: 1, 96>}, {transform_indices = @transform_5, window_bounds = array<i64: 16, 96>}]} {
    %c0 = arith.constant 0 : index
    %c0_0 = arith.constant 0 : index
    %0 = vector.load %arg2[%c0, %c0_0] : memref<16x32xf32, #tpu.memory_space<vmem>>, vector<16x32xf32>
    %cst = arith.constant dense<0.000000e+00> : vector<16xf32>
    %1 = vector.multi_reduction <add>, %0, %cst [1] : vector<16x32xf32> to vector<16xf32>
    %2 = vector.shape_cast %1 : vector<16xf32> to vector<16x1xf32>
    %cst_1 = arith.constant 3.200000e+01 : f32
    %3 = vector.broadcast %cst_1 : f32 to vector<16x1xf32>
    %4 = arith.divf %2, %3 : vector<16x1xf32>
    %5 = vector.broadcast %4 : vector<16x1xf32> to vector<16x32xf32>
    %6 = arith.subf %0, %5 : vector<16x32xf32>
    %7 = arith.mulf %6, %6 : vector<16x32xf32>
    %cst_2 = arith.constant dense<0.000000e+00> : vector<16xf32>
    %8 = vector.multi_reduction <add>, %7, %cst_2 [1] : vector<16x32xf32> to vector<16xf32>
    %9 = vector.shape_cast %8 : vector<16xf32> to vector<16x1xf32>
    %cst_3 = arith.constant 3.200000e+01 : f32
    %10 = vector.broadcast %cst_3 : f32 to vector<16x1xf32>
    %11 = arith.divf %9, %10 : vector<16x1xf32>
    %12 = vector.broadcast %4 : vector<16x1xf32> to vector<16x32xf32>
    %13 = arith.subf %0, %12 : vector<16x32xf32>
    %cst_4 = arith.constant 9.99999974E-6 : f32
    %14 = vector.broadcast %cst_4 : f32 to vector<16x1xf32>
    %15 = arith.addf %11, %14 : vector<16x1xf32>
    %16 = math.rsqrt %15 : vector<16x1xf32>
    %17 = vector.broadcast %16 : vector<16x1xf32> to vector<16x32xf32>
    %18 = arith.mulf %13, %17 : vector<16x32xf32>
    %c0_5 = arith.constant 0 : index
    %c0_6 = arith.constant 0 : index
    %19 = vector.load %arg3[%c0_5, %c0_6] : memref<1x32xf32, #tpu.memory_space<vmem>>, vector<1x32xf32>
    %20 = vector.broadcast %19 : vector<1x32xf32> to vector<16x32xf32>
    %21 = arith.mulf %18, %20 : vector<16x32xf32>
    %c0_7 = arith.constant 0 : index
    %c0_8 = arith.constant 0 : index
    %22 = vector.load %arg4[%c0_7, %c0_8] : memref<1x32xf32, #tpu.memory_space<vmem>>, vector<1x32xf32>
    %23 = vector.broadcast %22 : vector<1x32xf32> to vector<16x32xf32>
    %24 = arith.addf %21, %23 : vector<16x32xf32>
    %c0_9 = arith.constant 0 : index
    %c0_10 = arith.constant 0 : index
    %25 = vector.load %arg5[%c0_9, %c0_10] : memref<32x96xf32, #tpu.memory_space<vmem>>, vector<32x96xf32>
    %cst_11 = arith.constant dense<0.000000e+00> : vector<16x96xf32>
    %26 = tpu.matmul %24, %25, %cst_11 {dimension_numbers = #tpu.dot_dimension_numbers<[1], [0], [0], [1], [0, 0, 1, 1], [], []>} : vector<16x32xf32>, vector<32x96xf32>, vector<16x96xf32> -> vector<16x96xf32>
    %c0_12 = arith.constant 0 : index
    %c0_13 = arith.constant 0 : index
    %27 = vector.load %arg6[%c0_12, %c0_13] : memref<1x96xf32, #tpu.memory_space<vmem>>, vector<1x96xf32>
    %28 = vector.broadcast %27 : vector<1x96xf32> to vector<16x96xf32>
    %29 = arith.addf %26, %28 : vector<16x96xf32>
    %c0_14 = arith.constant 0 : index
    %c0_15 = arith.constant 0 : index
    %30 = vector.load %arg7[%c0_14, %c0_15] : memref<16x96xf32, #tpu.memory_space<vmem>>, vector<16x96xf32>
    tpu.vector_store %arg7[%c0_14, %c0_15], %29 {strides = array<i32>} : memref<16x96xf32, #tpu.memory_space<vmem>>, vector<16x96xf32>,
    return
  }
  func.func @transform_0(%arg0: i32, %arg1: i32) -> (i32, i32) {
    %c0_i32 = arith.constant 0 : i32
    %c0_i32_0 = arith.constant 0 : i32
    return %arg0, %c0_i32 : i32, i32
  }
  func.func @transform_1(%arg0: i32, %arg1: i32) -> (i32, i32) {
    %c0_i32 = arith.constant 0 : i32
    %c0_i32_0 = arith.constant 0 : i32
    %c0_i32_1 = arith.constant 0 : i32
    return %c0_i32, %c0_i32_0 : i32, i32
  }
  func.func @transform_2(%arg0: i32, %arg1: i32) -> (i32, i32) {
    %c0_i32 = arith.constant 0 : i32
    %c0_i32_0 = arith.constant 0 : i32
    %c0_i32_1 = arith.constant 0 : i32
    return %c0_i32, %c0_i32_0 : i32, i32
  }
  func.func @transform_3(%arg0: i32, %arg1: i32) -> (i32, i32) {
    %c0_i32 = arith.constant 0 : i32
    %c0_i32_0 = arith.constant 0 : i32
    return %c0_i32, %arg1 : i32, i32
  }
  func.func @transform_4(%arg0: i32, %arg1: i32) -> (i32, i32) {
    %c0_i32 = arith.constant 0 : i32
    %c0_i32_0 = arith.constant 0 : i32
    return %c0_i32, %arg1 : i32, i32
  }
  func.func @transform_5(%arg0: i32, %arg1: i32) -> (i32, i32) {
    %c0_i32 = arith.constant 0 : i32
    return %arg0, %arg1 : i32, i32
  }
}

module attributes {stable_mosaic.version = 11 : i64} {
  func.func @_attn_kernel(%arg0: i32, %arg1: memref<1x8x96xf32, #tpu.memory_space<vmem>>, %arg2: memref<32x32xf32, #tpu.memory_space<vmem>>, %arg3: memref<1x32xf32, #tpu.memory_space<vmem>>, %arg4: memref<1x8x32xf32, #tpu.memory_space<vmem>>, %arg5: memref<1x8x32xf32, #tpu.memory_space<vmem>>, %arg6: memref<8x32xf32, #tpu.memory_space<vmem>>) attributes {dimension_semantics = [#tpu.dimension_semantics<parallel>], iteration_bounds = array<i64: 2>, scalar_prefetch = 0 : i64, scratch_operands = 1 : i64, tpu.core_type = #tpu.core_type<tc>, window_params = [{transform_indices = @transform_0, window_bounds = array<i64: 1, 8, 96>}, {pipeline_mode = #tpu.pipeline_mode<synchronous>, transform_indices = @transform_1, window_bounds = array<i64: 32, 32>}, {pipeline_mode = #tpu.pipeline_mode<synchronous>, transform_indices = @transform_2, window_bounds = array<i64: 1, 32>}, {transform_indices = @transform_3, window_bounds = array<i64: 1, 8, 32>}, {transform_indices = @transform_4, window_bounds = array<i64: 1, 8, 32>}]} {
    %c0 = arith.constant 0 : index
    %c0_0 = arith.constant 0 : index
    %c0_1 = arith.constant 0 : index
    %0 = vector.load %arg1[%c0, %c0_0, %c0_1] : memref<1x8x96xf32, #tpu.memory_space<vmem>>, vector<1x8x96xf32>
    %1 = vector.shape_cast %0 : vector<1x8x96xf32> to vector<8x96xf32>
    %2 = tpu.iota {dimensions = array<i32: 0>} : vector<8x8xi32>
    %3 = tpu.iota {dimensions = array<i32: 1>} : vector<8x8xi32>
    %4 = arith.cmpi sle, %3, %2 : vector<8x8xi32>
    %5 = vector.extract_strided_slice %1 {offsets = [0, 0], sizes = [8, 8], strides = [1, 1]} : vector<8x96xf32> to vector<8x8xf32>
    %6 = vector.extract_strided_slice %1 {offsets = [0, 32], sizes = [8, 8], strides = [1, 1]} : vector<8x96xf32> to vector<8x8xf32>
    %7 = vector.extract_strided_slice %1 {offsets = [0, 64], sizes = [8, 8], strides = [1, 1]} : vector<8x96xf32> to vector<8x8xf32>
    %cst = arith.constant dense<0.000000e+00> : vector<8x8xf32>
    %8 = tpu.matmul %5, %6, %cst {dimension_numbers = #tpu.dot_dimension_numbers<[1], [1], [0], [0], [0, 0, 1, 0], [], []>} : vector<8x8xf32>, vector<8x8xf32>, vector<8x8xf32> -> vector<8x8xf32>
    %cst_2 = arith.constant 0.353553385 : f32
    %9 = vector.broadcast %cst_2 : f32 to vector<8x8xf32>
    %10 = arith.mulf %8, %9 : vector<8x8xf32>
    %cst_3 = arith.constant -1.000000e+30 : f32
    %11 = vector.broadcast %cst_3 : f32 to vector<8x8xf32>
    %12 = arith.select %4, %10, %11 : vector<8x8xi1>, vector<8x8xf32>
    %cst_4 = arith.constant dense<0xFF800000> : vector<8xf32>
    %13 = vector.multi_reduction <maximumf>, %12, %cst_4 [1] : vector<8x8xf32> to vector<8xf32>
    %14 = vector.shape_cast %13 : vector<8xf32> to vector<8x1xf32>
    %15 = vector.broadcast %14 : vector<8x1xf32> to vector<8x8xf32>
    %16 = arith.subf %12, %15 : vector<8x8xf32>
    %17 = math.exp %16 : vector<8x8xf32>
    %cst_5 = arith.constant dense<0.000000e+00> : vector<8xf32>
    %18 = vector.multi_reduction <add>, %17, %cst_5 [1] : vector<8x8xf32> to vector<8xf32>
    %19 = vector.shape_cast %18 : vector<8xf32> to vector<8x1xf32>
    %20 = vector.broadcast %19 : vector<8x1xf32> to vector<8x8xf32>
    %21 = arith.divf %17, %20 : vector<8x8xf32>
    %cst_6 = arith.constant dense<0.000000e+00> : vector<8x8xf32>
    %22 = tpu.matmul %21, %7, %cst_6 {dimension_numbers = #tpu.dot_dimension_numbers<[1], [0], [0], [1], [0, 0, 1, 1], [], []>} : vector<8x8xf32>, vector<8x8xf32>, vector<8x8xf32> -> vector<8x8xf32>
    %c0_7 = arith.constant 0 : index
    %c0_8 = arith.constant 0 : index
    %23 = vector.load %arg6[%c0_7, %c0_8] : memref<8x32xf32, #tpu.memory_space<vmem>>, vector<8x8xf32>
    tpu.vector_store %arg6[%c0_7, %c0_8], %22 {strides = array<i32>} : memref<8x32xf32, #tpu.memory_space<vmem>>, vector<8x8xf32>,
    %24 = vector.extract_strided_slice %1 {offsets = [0, 8], sizes = [8, 8], strides = [1, 1]} : vector<8x96xf32> to vector<8x8xf32>
    %25 = vector.extract_strided_slice %1 {offsets = [0, 40], sizes = [8, 8], strides = [1, 1]} : vector<8x96xf32> to vector<8x8xf32>
    %26 = vector.extract_strided_slice %1 {offsets = [0, 72], sizes = [8, 8], strides = [1, 1]} : vector<8x96xf32> to vector<8x8xf32>
    %cst_9 = arith.constant dense<0.000000e+00> : vector<8x8xf32>
    %27 = tpu.matmul %24, %25, %cst_9 {dimension_numbers = #tpu.dot_dimension_numbers<[1], [1], [0], [0], [0, 0, 1, 0], [], []>} : vector<8x8xf32>, vector<8x8xf32>, vector<8x8xf32> -> vector<8x8xf32>
    %cst_10 = arith.constant 0.353553385 : f32
    %28 = vector.broadcast %cst_10 : f32 to vector<8x8xf32>
    %29 = arith.mulf %27, %28 : vector<8x8xf32>
    %cst_11 = arith.constant -1.000000e+30 : f32
    %30 = vector.broadcast %cst_11 : f32 to vector<8x8xf32>
    %31 = arith.select %4, %29, %30 : vector<8x8xi1>, vector<8x8xf32>
    %cst_12 = arith.constant dense<0xFF800000> : vector<8xf32>
    %32 = vector.multi_reduction <maximumf>, %31, %cst_12 [1] : vector<8x8xf32> to vector<8xf32>
    %33 = vector.shape_cast %32 : vector<8xf32> to vector<8x1xf32>
    %34 = vector.broadcast %33 : vector<8x1xf32> to vector<8x8xf32>
    %35 = arith.subf %31, %34 : vector<8x8xf32>
    %36 = math.exp %35 : vector<8x8xf32>
    %cst_13 = arith.constant dense<0.000000e+00> : vector<8xf32>
    %37 = vector.multi_reduction <add>, %36, %cst_13 [1] : vector<8x8xf32> to vector<8xf32>
    %38 = vector.shape_cast %37 : vector<8xf32> to vector<8x1xf32>
    %39 = vector.broadcast %38 : vector<8x1xf32> to vector<8x8xf32>
    %40 = arith.divf %36, %39 : vector<8x8xf32>
    %cst_14 = arith.constant dense<0.000000e+00> : vector<8x8xf32>
    %41 = tpu.matmul %40, %26, %cst_14 {dimension_numbers = #tpu.dot_dimension_numbers<[1], [0], [0], [1], [0, 0, 1, 1], [], []>} : vector<8x8xf32>, vector<8x8xf32>, vector<8x8xf32> -> vector<8x8xf32>
    %c0_15 = arith.constant 0 : index
    %c8 = arith.constant 8 : index
    %42 = vector.load %arg6[%c0_15, %c8] : memref<8x32xf32, #tpu.memory_space<vmem>>, vector<8x8xf32>
    tpu.vector_store %arg6[%c0_15, %c8], %41 {strides = array<i32>} : memref<8x32xf32, #tpu.memory_space<vmem>>, vector<8x8xf32>,
    %43 = vector.extract_strided_slice %1 {offsets = [0, 16], sizes = [8, 8], strides = [1, 1]} : vector<8x96xf32> to vector<8x8xf32>
    %44 = vector.extract_strided_slice %1 {offsets = [0, 48], sizes = [8, 8], strides = [1, 1]} : vector<8x96xf32> to vector<8x8xf32>
    %45 = vector.extract_strided_slice %1 {offsets = [0, 80], sizes = [8, 8], strides = [1, 1]} : vector<8x96xf32> to vector<8x8xf32>
    %cst_16 = arith.constant dense<0.000000e+00> : vector<8x8xf32>
    %46 = tpu.matmul %43, %44, %cst_16 {dimension_numbers = #tpu.dot_dimension_numbers<[1], [1], [0], [0], [0, 0, 1, 0], [], []>} : vector<8x8xf32>, vector<8x8xf32>, vector<8x8xf32> -> vector<8x8xf32>
    %cst_17 = arith.constant 0.353553385 : f32
    %47 = vector.broadcast %cst_17 : f32 to vector<8x8xf32>
    %48 = arith.mulf %46, %47 : vector<8x8xf32>
    %cst_18 = arith.constant -1.000000e+30 : f32
    %49 = vector.broadcast %cst_18 : f32 to vector<8x8xf32>
    %50 = arith.select %4, %48, %49 : vector<8x8xi1>, vector<8x8xf32>
    %cst_19 = arith.constant dense<0xFF800000> : vector<8xf32>
    %51 = vector.multi_reduction <maximumf>, %50, %cst_19 [1] : vector<8x8xf32> to vector<8xf32>
    %52 = vector.shape_cast %51 : vector<8xf32> to vector<8x1xf32>
    %53 = vector.broadcast %52 : vector<8x1xf32> to vector<8x8xf32>
    %54 = arith.subf %50, %53 : vector<8x8xf32>
    %55 = math.exp %54 : vector<8x8xf32>
    %cst_20 = arith.constant dense<0.000000e+00> : vector<8xf32>
    %56 = vector.multi_reduction <add>, %55, %cst_20 [1] : vector<8x8xf32> to vector<8xf32>
    %57 = vector.shape_cast %56 : vector<8xf32> to vector<8x1xf32>
    %58 = vector.broadcast %57 : vector<8x1xf32> to vector<8x8xf32>
    %59 = arith.divf %55, %58 : vector<8x8xf32>
    %cst_21 = arith.constant dense<0.000000e+00> : vector<8x8xf32>
    %60 = tpu.matmul %59, %45, %cst_21 {dimension_numbers = #tpu.dot_dimension_numbers<[1], [0], [0], [1], [0, 0, 1, 1], [], []>} : vector<8x8xf32>, vector<8x8xf32>, vector<8x8xf32> -> vector<8x8xf32>
    %c0_22 = arith.constant 0 : index
    %c16 = arith.constant 16 : index
    %61 = vector.load %arg6[%c0_22, %c16] : memref<8x32xf32, #tpu.memory_space<vmem>>, vector<8x8xf32>
    tpu.vector_store %arg6[%c0_22, %c16], %60 {strides = array<i32>} : memref<8x32xf32, #tpu.memory_space<vmem>>, vector<8x8xf32>,
    %62 = vector.extract_strided_slice %1 {offsets = [0, 24], sizes = [8, 8], strides = [1, 1]} : vector<8x96xf32> to vector<8x8xf32>
    %63 = vector.extract_strided_slice %1 {offsets = [0, 56], sizes = [8, 8], strides = [1, 1]} : vector<8x96xf32> to vector<8x8xf32>
    %64 = vector.extract_strided_slice %1 {offsets = [0, 88], sizes = [8, 8], strides = [1, 1]} : vector<8x96xf32> to vector<8x8xf32>
    %cst_23 = arith.constant dense<0.000000e+00> : vector<8x8xf32>
    %65 = tpu.matmul %62, %63, %cst_23 {dimension_numbers = #tpu.dot_dimension_numbers<[1], [1], [0], [0], [0, 0, 1, 0], [], []>} : vector<8x8xf32>, vector<8x8xf32>, vector<8x8xf32> -> vector<8x8xf32>
    %cst_24 = arith.constant 0.353553385 : f32
    %66 = vector.broadcast %cst_24 : f32 to vector<8x8xf32>
    %67 = arith.mulf %65, %66 : vector<8x8xf32>
    %cst_25 = arith.constant -1.000000e+30 : f32
    %68 = vector.broadcast %cst_25 : f32 to vector<8x8xf32>
    %69 = arith.select %4, %67, %68 : vector<8x8xi1>, vector<8x8xf32>
    %cst_26 = arith.constant dense<0xFF800000> : vector<8xf32>
    %70 = vector.multi_reduction <maximumf>, %69, %cst_26 [1] : vector<8x8xf32> to vector<8xf32>
    %71 = vector.shape_cast %70 : vector<8xf32> to vector<8x1xf32>
    %72 = vector.broadcast %71 : vector<8x1xf32> to vector<8x8xf32>
    %73 = arith.subf %69, %72 : vector<8x8xf32>
    %74 = math.exp %73 : vector<8x8xf32>
    %cst_27 = arith.constant dense<0.000000e+00> : vector<8xf32>
    %75 = vector.multi_reduction <add>, %74, %cst_27 [1] : vector<8x8xf32> to vector<8xf32>
    %76 = vector.shape_cast %75 : vector<8xf32> to vector<8x1xf32>
    %77 = vector.broadcast %76 : vector<8x1xf32> to vector<8x8xf32>
    %78 = arith.divf %74, %77 : vector<8x8xf32>
    %cst_28 = arith.constant dense<0.000000e+00> : vector<8x8xf32>
    %79 = tpu.matmul %78, %64, %cst_28 {dimension_numbers = #tpu.dot_dimension_numbers<[1], [0], [0], [1], [0, 0, 1, 1], [], []>} : vector<8x8xf32>, vector<8x8xf32>, vector<8x8xf32> -> vector<8x8xf32>
    %c0_29 = arith.constant 0 : index
    %c24 = arith.constant 24 : index
    %80 = vector.load %arg6[%c0_29, %c24] : memref<8x32xf32, #tpu.memory_space<vmem>>, vector<8x8xf32>
    tpu.vector_store %arg6[%c0_29, %c24], %79 {strides = array<i32>} : memref<8x32xf32, #tpu.memory_space<vmem>>, vector<8x8xf32>,
    %c0_30 = arith.constant 0 : index
    %c0_31 = arith.constant 0 : index
    %81 = vector.load %arg6[%c0_30, %c0_31] : memref<8x32xf32, #tpu.memory_space<vmem>>, vector<8x32xf32>
    %c0_32 = arith.constant 0 : index
    %c0_33 = arith.constant 0 : index
    %82 = vector.load %arg2[%c0_32, %c0_33] : memref<32x32xf32, #tpu.memory_space<vmem>>, vector<32x32xf32>
    %cst_34 = arith.constant dense<0.000000e+00> : vector<8x32xf32>
    %83 = tpu.matmul %81, %82, %cst_34 {dimension_numbers = #tpu.dot_dimension_numbers<[1], [0], [0], [1], [0, 0, 1, 1], [], []>} : vector<8x32xf32>, vector<32x32xf32>, vector<8x32xf32> -> vector<8x32xf32>
    %c0_35 = arith.constant 0 : index
    %c0_36 = arith.constant 0 : index
    %84 = vector.load %arg3[%c0_35, %c0_36] : memref<1x32xf32, #tpu.memory_space<vmem>>, vector<1x32xf32>
    %85 = vector.broadcast %84 : vector<1x32xf32> to vector<8x32xf32>
    %86 = arith.addf %83, %85 : vector<8x32xf32>
    %c0_37 = arith.constant 0 : index
    %c0_38 = arith.constant 0 : index
    %c0_39 = arith.constant 0 : index
    %87 = vector.load %arg4[%c0_37, %c0_38, %c0_39] : memref<1x8x32xf32, #tpu.memory_space<vmem>>, vector<1x8x32xf32>
    %88 = vector.shape_cast %87 : vector<1x8x32xf32> to vector<8x32xf32>
    %89 = arith.addf %86, %88 : vector<8x32xf32>
    %c0_40 = arith.constant 0 : index
    %c0_41 = arith.constant 0 : index
    %c0_42 = arith.constant 0 : index
    %90 = vector.load %arg5[%c0_40, %c0_41, %c0_42] : memref<1x8x32xf32, #tpu.memory_space<vmem>>, vector<1x8x32xf32>
    %91 = vector.shape_cast %90 : vector<1x8x32xf32> to vector<8x32xf32>
    %92 = vector.shape_cast %89 : vector<8x32xf32> to vector<1x8x32xf32>
    tpu.vector_store %arg5[%c0_40, %c0_41, %c0_42], %92 {strides = array<i32>} : memref<1x8x32xf32, #tpu.memory_space<vmem>>, vector<1x8x32xf32>,
    return
  }
  func.func @transform_0(%arg0: i32) -> (i32, i32, i32) {
    %c0_i32 = arith.constant 0 : i32
    %c0_i32_0 = arith.constant 0 : i32
    %c0_i32_1 = arith.constant 0 : i32
    return %arg0, %c0_i32, %c0_i32_0 : i32, i32, i32
  }
  func.func @transform_1(%arg0: i32) -> (i32, i32) {
    %c0_i32 = arith.constant 0 : i32
    %c0_i32_0 = arith.constant 0 : i32
    %c0_i32_1 = arith.constant 0 : i32
    return %c0_i32, %c0_i32_0 : i32, i32
  }
  func.func @transform_2(%arg0: i32) -> (i32, i32) {
    %c0_i32 = arith.constant 0 : i32
    %c0_i32_0 = arith.constant 0 : i32
    %c0_i32_1 = arith.constant 0 : i32
    return %c0_i32, %c0_i32_0 : i32, i32
  }
  func.func @transform_3(%arg0: i32) -> (i32, i32, i32) {
    %c0_i32 = arith.constant 0 : i32
    %c0_i32_0 = arith.constant 0 : i32
    %c0_i32_1 = arith.constant 0 : i32
    return %arg0, %c0_i32, %c0_i32_0 : i32, i32, i32
  }
  func.func @transform_4(%arg0: i32) -> (i32, i32, i32) {
    %c0_i32 = arith.constant 0 : i32
    %c0_i32_0 = arith.constant 0 : i32
    %c0_i32_1 = arith.constant 0 : i32
    return %arg0, %c0_i32, %c0_i32_0 : i32, i32, i32
  }
}

module attributes {stable_mosaic.version = 11 : i64} {
  func.func @_ln_matmul_kernel(%arg0: i32, %arg1: i32, %arg2: memref<16x32xf32, #tpu.memory_space<vmem>>, %arg3: memref<1x32xf32, #tpu.memory_space<vmem>>, %arg4: memref<1x32xf32, #tpu.memory_space<vmem>>, %arg5: memref<32x64xf32, #tpu.memory_space<vmem>>, %arg6: memref<1x64xf32, #tpu.memory_space<vmem>>, %arg7: memref<16x64xf32, #tpu.memory_space<vmem>>) attributes {dimension_semantics = [#tpu.dimension_semantics<parallel>, #tpu.dimension_semantics<parallel>], iteration_bounds = array<i64: 1, 1>, scalar_prefetch = 0 : i64, scratch_operands = 0 : i64, tpu.core_type = #tpu.core_type<tc>, window_params = [{transform_indices = @transform_0, window_bounds = array<i64: 16, 32>}, {pipeline_mode = #tpu.pipeline_mode<synchronous>, transform_indices = @transform_1, window_bounds = array<i64: 1, 32>}, {pipeline_mode = #tpu.pipeline_mode<synchronous>, transform_indices = @transform_2, window_bounds = array<i64: 1, 32>}, {transform_indices = @transform_3, window_bounds = array<i64: 32, 64>}, {transform_indices = @transform_4, window_bounds = array<i64: 1, 64>}, {transform_indices = @transform_5, window_bounds = array<i64: 16, 64>}]} {
    %c0 = arith.constant 0 : index
    %c0_0 = arith.constant 0 : index
    %0 = vector.load %arg2[%c0, %c0_0] : memref<16x32xf32, #tpu.memory_space<vmem>>, vector<16x32xf32>
    %cst = arith.constant dense<0.000000e+00> : vector<16xf32>
    %1 = vector.multi_reduction <add>, %0, %cst [1] : vector<16x32xf32> to vector<16xf32>
    %2 = vector.shape_cast %1 : vector<16xf32> to vector<16x1xf32>
    %cst_1 = arith.constant 3.200000e+01 : f32
    %3 = vector.broadcast %cst_1 : f32 to vector<16x1xf32>
    %4 = arith.divf %2, %3 : vector<16x1xf32>
    %5 = vector.broadcast %4 : vector<16x1xf32> to vector<16x32xf32>
    %6 = arith.subf %0, %5 : vector<16x32xf32>
    %7 = arith.mulf %6, %6 : vector<16x32xf32>
    %cst_2 = arith.constant dense<0.000000e+00> : vector<16xf32>
    %8 = vector.multi_reduction <add>, %7, %cst_2 [1] : vector<16x32xf32> to vector<16xf32>
    %9 = vector.shape_cast %8 : vector<16xf32> to vector<16x1xf32>
    %cst_3 = arith.constant 3.200000e+01 : f32
    %10 = vector.broadcast %cst_3 : f32 to vector<16x1xf32>
    %11 = arith.divf %9, %10 : vector<16x1xf32>
    %12 = vector.broadcast %4 : vector<16x1xf32> to vector<16x32xf32>
    %13 = arith.subf %0, %12 : vector<16x32xf32>
    %cst_4 = arith.constant 9.99999974E-6 : f32
    %14 = vector.broadcast %cst_4 : f32 to vector<16x1xf32>
    %15 = arith.addf %11, %14 : vector<16x1xf32>
    %16 = math.rsqrt %15 : vector<16x1xf32>
    %17 = vector.broadcast %16 : vector<16x1xf32> to vector<16x32xf32>
    %18 = arith.mulf %13, %17 : vector<16x32xf32>
    %c0_5 = arith.constant 0 : index
    %c0_6 = arith.constant 0 : index
    %19 = vector.load %arg3[%c0_5, %c0_6] : memref<1x32xf32, #tpu.memory_space<vmem>>, vector<1x32xf32>
    %20 = vector.broadcast %19 : vector<1x32xf32> to vector<16x32xf32>
    %21 = arith.mulf %18, %20 : vector<16x32xf32>
    %c0_7 = arith.constant 0 : index
    %c0_8 = arith.constant 0 : index
    %22 = vector.load %arg4[%c0_7, %c0_8] : memref<1x32xf32, #tpu.memory_space<vmem>>, vector<1x32xf32>
    %23 = vector.broadcast %22 : vector<1x32xf32> to vector<16x32xf32>
    %24 = arith.addf %21, %23 : vector<16x32xf32>
    %c0_9 = arith.constant 0 : index
    %c0_10 = arith.constant 0 : index
    %25 = vector.load %arg5[%c0_9, %c0_10] : memref<32x64xf32, #tpu.memory_space<vmem>>, vector<32x64xf32>
    %cst_11 = arith.constant dense<0.000000e+00> : vector<16x64xf32>
    %26 = tpu.matmul %24, %25, %cst_11 {dimension_numbers = #tpu.dot_dimension_numbers<[1], [0], [0], [1], [0, 0, 1, 1], [], []>} : vector<16x32xf32>, vector<32x64xf32>, vector<16x64xf32> -> vector<16x64xf32>
    %c0_12 = arith.constant 0 : index
    %c0_13 = arith.constant 0 : index
    %27 = vector.load %arg6[%c0_12, %c0_13] : memref<1x64xf32, #tpu.memory_space<vmem>>, vector<1x64xf32>
    %28 = vector.broadcast %27 : vector<1x64xf32> to vector<16x64xf32>
    %29 = arith.addf %26, %28 : vector<16x64xf32>
    %cst_14 = arith.constant 0.000000e+00 : f32
    %30 = vector.broadcast %cst_14 : f32 to vector<16x64xf32>
    %31 = arith.maximumf %29, %30 : vector<16x64xf32>
    %c0_15 = arith.constant 0 : index
    %c0_16 = arith.constant 0 : index
    %32 = vector.load %arg7[%c0_15, %c0_16] : memref<16x64xf32, #tpu.memory_space<vmem>>, vector<16x64xf32>
    tpu.vector_store %arg7[%c0_15, %c0_16], %31 {strides = array<i32>} : memref<16x64xf32, #tpu.memory_space<vmem>>, vector<16x64xf32>,
    return
  }
  func.func @transform_0(%arg0: i32, %arg1: i32) -> (i32, i32) {
    %c0_i32 = arith.constant 0 : i32
    %c0_i32_0 = arith.constant 0 : i32
    return %arg0, %c0_i32 : i32, i32
  }
  func.func @transform_1(%arg0: i32, %arg1: i32) -> (i32, i32) {
    %c0_i32 = arith.constant 0 : i32
    %c0_i32_0 = arith.constant 0 : i32
    %c0_i32_1 = arith.constant 0 : i32
    return %c0_i32, %c0_i32_0 : i32, i32
  }
  func.func @transform_2(%arg0: i32, %arg1: i32) -> (i32, i32) {
    %c0_i32 = arith.constant 0 : i32
    %c0_i32_0 = arith.constant 0 : i32
    %c0_i32_1 = arith.constant 0 : i32
    return %c0_i32, %c0_i32_0 : i32, i32
  }
  func.func @transform_3(%arg0: i32, %arg1: i32) -> (i32, i32) {
    %c0_i32 = arith.constant 0 : i32
    %c0_i32_0 = arith.constant 0 : i32
    return %c0_i32, %arg1 : i32, i32
  }
  func.func @transform_4(%arg0: i32, %arg1: i32) -> (i32, i32) {
    %c0_i32 = arith.constant 0 : i32
    %c0_i32_0 = arith.constant 0 : i32
    return %c0_i32, %arg1 : i32, i32
  }
  func.func @transform_5(%arg0: i32, %arg1: i32) -> (i32, i32) {
    %c0_i32 = arith.constant 0 : i32
    return %arg0, %arg1 : i32, i32
  }
}

module attributes {stable_mosaic.version = 11 : i64} {
  func.func @_matmul_kernel(%arg0: i32, %arg1: i32, %arg2: i32, %arg3: memref<16x64xf32, #tpu.memory_space<vmem>>, %arg4: memref<64x32xf32, #tpu.memory_space<vmem>>, %arg5: memref<1x32xf32, #tpu.memory_space<vmem>>, %arg6: memref<16x32xf32, #tpu.memory_space<vmem>>, %arg7: memref<16x32xf32, #tpu.memory_space<vmem>>, %arg8: memref<16x32xf32, #tpu.memory_space<vmem>>) attributes {dimension_semantics = [#tpu.dimension_semantics<parallel>, #tpu.dimension_semantics<parallel>, #tpu.dimension_semantics<arbitrary>], iteration_bounds = array<i64: 1, 1, 1>, scalar_prefetch = 0 : i64, scratch_operands = 1 : i64, tpu.core_type = #tpu.core_type<tc>, window_params = [{transform_indices = @transform_0, window_bounds = array<i64: 16, 64>}, {transform_indices = @transform_1, window_bounds = array<i64: 64, 32>}, {transform_indices = @transform_2, window_bounds = array<i64: 1, 32>}, {transform_indices = @transform_3, window_bounds = array<i64: 16, 32>}, {transform_indices = @transform_4, window_bounds = array<i64: 16, 32>}]} {
    %c0_i32 = arith.constant 0 : i32
    %0 = arith.cmpi eq, %arg2, %c0_i32 : i32
    %1 = arith.extui %0 : i1 to i32
    %c0_i32_0 = arith.constant 0 : i32
    %2 = arith.cmpi ne, %1, %c0_i32_0 : i32
    scf.if %2 {
      %cst_10 = arith.constant 0.000000e+00 : f32
      %12 = vector.broadcast %cst_10 : f32 to vector<16x32xf32>
      %c0_11 = arith.constant 0 : index
      %c0_12 = arith.constant 0 : index
      %13 = vector.load %arg8[%c0_11, %c0_12] : memref<16x32xf32, #tpu.memory_space<vmem>>, vector<16x32xf32>
      tpu.vector_store %arg8[%c0_11, %c0_12], %12 {strides = array<i32>} : memref<16x32xf32, #tpu.memory_space<vmem>>, vector<16x32xf32>,
    } else {
    }
    %c0 = arith.constant 0 : index
    %c0_1 = arith.constant 0 : index
    %3 = vector.load %arg8[%c0, %c0_1] : memref<16x32xf32, #tpu.memory_space<vmem>>, vector<16x32xf32>
    %c0_2 = arith.constant 0 : index
    %c0_3 = arith.constant 0 : index
    %4 = vector.load %arg3[%c0_2, %c0_3] : memref<16x64xf32, #tpu.memory_space<vmem>>, vector<16x64xf32>
    %c0_4 = arith.constant 0 : index
    %c0_5 = arith.constant 0 : index
    %5 = vector.load %arg4[%c0_4, %c0_5] : memref<64x32xf32, #tpu.memory_space<vmem>>, vector<64x32xf32>
    %cst = arith.constant dense<0.000000e+00> : vector<16x32xf32>
    %6 = tpu.matmul %4, %5, %cst {dimension_numbers = #tpu.dot_dimension_numbers<[1], [0], [0], [1], [0, 0, 1, 1], [], []>} : vector<16x64xf32>, vector<64x32xf32>, vector<16x32xf32> -> vector<16x32xf32>
    %7 = arith.addf %3, %6 : vector<16x32xf32>
    %c0_6 = arith.constant 0 : index
    %c0_7 = arith.constant 0 : index
    %8 = vector.load %arg8[%c0_6, %c0_7] : memref<16x32xf32, #tpu.memory_space<vmem>>, vector<16x32xf32>
    tpu.vector_store %arg8[%c0_6, %c0_7], %7 {strides = array<i32>} : memref<16x32xf32, #tpu.memory_space<vmem>>, vector<16x32xf32>,
    %c0_i32_8 = arith.constant 0 : i32
    %9 = arith.cmpi eq, %arg2, %c0_i32_8 : i32
    %10 = arith.extui %9 : i1 to i32
    %c0_i32_9 = arith.constant 0 : i32
    %11 = arith.cmpi ne, %10, %c0_i32_9 : i32
    scf.if %11 {
      %c0_10 = arith.constant 0 : index
      %c0_11 = arith.constant 0 : index
      %12 = vector.load %arg8[%c0_10, %c0_11] : memref<16x32xf32, #tpu.memory_space<vmem>>, vector<16x32xf32>
      %c0_12 = arith.constant 0 : index
      %c0_13 = arith.constant 0 : index
      %13 = vector.load %arg5[%c0_12, %c0_13] : memref<1x32xf32, #tpu.memory_space<vmem>>, vector<1x32xf32>
      %14 = vector.broadcast %13 : vector<1x32xf32> to vector<16x32xf32>
      %15 = arith.addf %12, %14 : vector<16x32xf32>
      %c0_14 = arith.constant 0 : index
      %c0_15 = arith.constant 0 : index
      %16 = vector.load %arg6[%c0_14, %c0_15] : memref<16x32xf32, #tpu.memory_space<vmem>>, vector<16x32xf32>
      %17 = arith.addf %15, %16 : vector<16x32xf32>
      %c0_16 = arith.constant 0 : index
      %c0_17 = arith.constant 0 : index
      %18 = vector.load %arg7[%c0_16, %c0_17] : memref<16x32xf32, #tpu.memory_space<vmem>>, vector<16x32xf32>
      tpu.vector_store %arg7[%c0_16, %c0_17], %17 {strides = array<i32>} : memref<16x32xf32, #tpu.memory_space<vmem>>, vector<16x32xf32>,
    } else {
    }
    return
  }
  func.func @transform_0(%arg0: i32, %arg1: i32, %arg2: i32) -> (i32, i32) {
    %c0_i32 = arith.constant 0 : i32
    return %arg0, %arg2 : i32, i32
  }
  func.func @transform_1(%arg0: i32, %arg1: i32, %arg2: i32) -> (i32, i32) {
    %c0_i32 = arith.constant 0 : i32
    return %arg2, %arg1 : i32, i32
  }
  func.func @transform_2(%arg0: i32, %arg1: i32, %arg2: i32) -> (i32, i32) {
    %c0_i32 = arith.constant 0 : i32
    %c0_i32_0 = arith.constant 0 : i32
    return %c0_i32, %arg1 : i32, i32
  }
  func.func @transform_3(%arg0: i32, %arg1: i32, %arg2: i32) -> (i32, i32) {
    %c0_i32 = arith.constant 0 : i32
    return %arg0, %arg1 : i32, i32
  }
  func.func @transform_4(%arg0: i32, %arg1: i32, %arg2: i32) -> (i32, i32) {
    %c0_i32 = arith.constant 0 : i32
    return %arg0, %arg1 : i32, i32
  }
}

module attributes {stable_mosaic.version = 11 : i64} {
  func.func @_matmul_kernel(%arg0: i32, %arg1: i32, %arg2: i32, %arg3: memref<16x32xf32, #tpu.memory_space<vmem>>, %arg4: memref<32x64xf32, #tpu.memory_space<vmem>>, %arg5: memref<16x64xf32, #tpu.memory_space<vmem>>, %arg6: memref<16x64xf32, #tpu.memory_space<vmem>>) attributes {dimension_semantics = [#tpu.dimension_semantics<parallel>, #tpu.dimension_semantics<parallel>, #tpu.dimension_semantics<arbitrary>], iteration_bounds = array<i64: 1, 1, 1>, scalar_prefetch = 0 : i64, scratch_operands = 1 : i64, tpu.core_type = #tpu.core_type<tc>, window_params = [{transform_indices = @transform_0, window_bounds = array<i64: 16, 32>}, {transform_indices = @transform_1, window_bounds = array<i64: 32, 64>}, {transform_indices = @transform_2, window_bounds = array<i64: 16, 64>}]} {
    %c0_i32 = arith.constant 0 : i32
    %0 = arith.cmpi eq, %arg2, %c0_i32 : i32
    %1 = arith.extui %0 : i1 to i32
    %c0_i32_0 = arith.constant 0 : i32
    %2 = arith.cmpi ne, %1, %c0_i32_0 : i32
    scf.if %2 {
      %cst_10 = arith.constant 0.000000e+00 : f32
      %12 = vector.broadcast %cst_10 : f32 to vector<16x64xf32>
      %c0_11 = arith.constant 0 : index
      %c0_12 = arith.constant 0 : index
      %13 = vector.load %arg6[%c0_11, %c0_12] : memref<16x64xf32, #tpu.memory_space<vmem>>, vector<16x64xf32>
      tpu.vector_store %arg6[%c0_11, %c0_12], %12 {strides = array<i32>} : memref<16x64xf32, #tpu.memory_space<vmem>>, vector<16x64xf32>,
    } else {
    }
    %c0 = arith.constant 0 : index
    %c0_1 = arith.constant 0 : index
    %3 = vector.load %arg6[%c0, %c0_1] : memref<16x64xf32, #tpu.memory_space<vmem>>, vector<16x64xf32>
    %c0_2 = arith.constant 0 : index
    %c0_3 = arith.constant 0 : index
    %4 = vector.load %arg3[%c0_2, %c0_3] : memref<16x32xf32, #tpu.memory_space<vmem>>, vector<16x32xf32>
    %c0_4 = arith.constant 0 : index
    %c0_5 = arith.constant 0 : index
    %5 = vector.load %arg4[%c0_4, %c0_5] : memref<32x64xf32, #tpu.memory_space<vmem>>, vector<32x64xf32>
    %cst = arith.constant dense<0.000000e+00> : vector<16x64xf32>
    %6 = tpu.matmul %4, %5, %cst {dimension_numbers = #tpu.dot_dimension_numbers<[1], [0], [0], [1], [0, 0, 1, 1], [], []>} : vector<16x32xf32>, vector<32x64xf32>, vector<16x64xf32> -> vector<16x64xf32>
    %7 = arith.addf %3, %6 : vector<16x64xf32>
    %c0_6 = arith.constant 0 : index
    %c0_7 = arith.constant 0 : index
    %8 = vector.load %arg6[%c0_6, %c0_7] : memref<16x64xf32, #tpu.memory_space<vmem>>, vector<16x64xf32>
    tpu.vector_store %arg6[%c0_6, %c0_7], %7 {strides = array<i32>} : memref<16x64xf32, #tpu.memory_space<vmem>>, vector<16x64xf32>,
    %c0_i32_8 = arith.constant 0 : i32
    %9 = arith.cmpi eq, %arg2, %c0_i32_8 : i32
    %10 = arith.extui %9 : i1 to i32
    %c0_i32_9 = arith.constant 0 : i32
    %11 = arith.cmpi ne, %10, %c0_i32_9 : i32
    scf.if %11 {
      %c0_10 = arith.constant 0 : index
      %c0_11 = arith.constant 0 : index
      %12 = vector.load %arg6[%c0_10, %c0_11] : memref<16x64xf32, #tpu.memory_space<vmem>>, vector<16x64xf32>
      %c0_12 = arith.constant 0 : index
      %c0_13 = arith.constant 0 : index
      %13 = vector.load %arg5[%c0_12, %c0_13] : memref<16x64xf32, #tpu.memory_space<vmem>>, vector<16x64xf32>
      tpu.vector_store %arg5[%c0_12, %c0_13], %12 {strides = array<i32>} : memref<16x64xf32, #tpu.memory_space<vmem>>, vector<16x64xf32>,
    } else {
    }
    return
  }
  func.func @transform_0(%arg0: i32, %arg1: i32, %arg2: i32) -> (i32, i32) {
    %c0_i32 = arith.constant 0 : i32
    return %arg0, %arg2 : i32, i32
  }
  func.func @transform_1(%arg0: i32, %arg1: i32, %arg2: i32) -> (i32, i32) {
    %c0_i32 = arith.constant 0 : i32
    return %arg2, %arg1 : i32, i32
  }
  func.func @transform_2(%arg0: i32, %arg1: i32, %arg2: i32) -> (i32, i32) {
    %c0_i32 = arith.constant 0 : i32
    return %arg0, %arg1 : i32, i32
  }
}

</mosaic_0001>

<llo_original>
// kernel: transformer_forward.9
$region0: #{transformer_forward.9}
  #allocation0 [shape = 'u32[]', space=smem, size = 0x4, offset = 0x4, fixed_abs, tag = 'smem constant byte address 0x4 - core index']
  #allocation1 [shape = 'u32[72,128]{1,0:T(1,128)}', space=vmem, size = 0x9000, scoped, tag = 'internal scratch']
  %s0 = inlined_call_operand.vmem [shape: f32[16,32], index: 0, kind: input, shape index: {}]
  %s1 = inlined_call_operand.vmem [shape: f32[1,32], index: 1, kind: input, shape index: {}]
  %s2 = inlined_call_operand.vmem [shape: f32[1,32], index: 2, kind: input, shape index: {}]
  %s3 = inlined_call_operand.vmem [shape: f32[32,96], index: 3, kind: input, shape index: {}]
  %s4 = inlined_call_operand.vmem [shape: f32[1,96], index: 4, kind: input, shape index: {}]
  %s5 = inlined_call_operand.vmem [shape: f32[16,96], index: 5, kind: output, shape index: {}]
  %s6 = sld [smem:[#allocation0]]
  $region30: #{transformer_forward.9} parent=0
    _
  %s8 = ssub.s32 1, %s6
  %s9 = scalar_select 0, %s8, %s6
  // Predicated region
  $region2: #{transformer_forward.9} parent=0 // pred_check
    _
  $region3: #{transformer_forward.9} parent=0 // pred_check_branch
    %11 = sbr.rel (0) target = $region5
  $region4: #{transformer_forward.9} parent=0 // pred_region
    _
  $region5: #{transformer_forward.9} parent=0 // pred_fallthru
    _
  // Predicated region
  $region6: #{transformer_forward.9} parent=0 // pred_check
    _
  $region7: #{transformer_forward.9} parent=0 // pred_check_branch
    %13 = sbr.rel (0) target = $region9
  $region8: #{transformer_forward.9} parent=0 // pred_region
    _
  $region9: #{transformer_forward.9} parent=0 // pred_fallthru
    _
  // Predicated region
  $region10: #{transformer_forward.9} parent=0 // pred_check
    _
  $region11: #{transformer_forward.9} parent=0 // pred_check_branch
    %15 = sbr.rel (0) target = $region13
  $region12: #{transformer_forward.9} parent=0 // pred_region
    _
  $region13: #{transformer_forward.9} parent=0 // pred_fallthru
    _
  // Predicated region
  $region14: #{transformer_forward.9} parent=0 // pred_check
    _
  $region15: #{transformer_forward.9} parent=0 // pred_check_branch
    %17 = sbr.rel (0) target = $region17
  $region16: #{transformer_forward.9} parent=0 // pred_region
    _
  $region17: #{transformer_forward.9} parent=0 // pred_fallthru
    _
  // Predicated region
  $region18: #{transformer_forward.9} parent=0 // pred_check
    _
  $region19: #{transformer_forward.9} parent=0 // pred_check_branch
    %19 = sbr.rel (0) target = $region21
  $region20: #{transformer_forward.9} parent=0 // pred_region
    _
  $region21: #{transformer_forward.9} parent=0 // pred_fallthru
    _
  %v20 = vld [vmem:[%s0] sm:$0xff]
  %v21 = vld [vmem:[%s0 + $0x8] sm:$0xff]
  %vm22 = vcmask 261120
  %v23 = vsel %vm22, %v20, 0.0
  %24 = vadd.xlane.f32.xlu0 %v23
  %v25 = vpop.xlane.xlu0 %24
  %v26 = vsel %vm22, %v21, 0.0
  %27 = vadd.xlane.f32.xlu0 %v26
  %v28 = vpop.xlane.xlu0 %27
  %v29 = vrcp.pop 32.0
  %v30 = vmul.f32 32.0, %v29
  %v31 = vsub.f32 1.0, %v30
  %v32 = vmul.f32 %v29, %v31
  %v33 = vadd.f32 %v29, %v32
  %vm34 = vweird.f32 %v29
  %v35 = vsel %vm34, %v29, %v33
  %v36 = vmul.f32 %v25, %v35
  %v37 = vmul.f32 %v28, %v35
  %v38 = vsub.f32 %v20, %v36
  %v39 = vsub.f32 %v21, %v37
  %v40 = vmul.f32 %v38, %v38
  %v41 = vmul.f32 %v39, %v39
  %v42 = vsel %vm22, %v40, 0.0
  %43 = vadd.xlane.f32.xlu0 %v42
  %v44 = vpop.xlane.xlu0 %43
  %v45 = vsel %vm22, %v41, 0.0
  %46 = vadd.xlane.f32.xlu0 %v45
  %v47 = vpop.xlane.xlu0 %46
  %v48 = vmul.f32 %v44, %v35
  %v49 = vmul.f32 %v47, %v35
  %v50 = vadd.f32 %v48, 1e-05
  %v51 = vadd.f32 %v49, 1e-05
  %v52 = vrsqrt.pop %v50
  %v53 = vmul.f32 %v52, %v50
  %v54 = vmul.f32 %v53, %v52
  %v55 = vmul.f32 0.5, %v54
  %v56 = vsub.f32 1.5, %v55
  %v57 = vmul.f32 %v52, %v56
  %vm58 = vweird.f32 %v50
  %vm59 = vweird.f32 %v52
  %vm60 = vmor %vm58, %vm59
  %v61 = vsel %vm60, %v52, %v57
  %v62 = vrsqrt.pop %v51
  %v63 = vmul.f32 %v62, %v51
  %v64 = vmul.f32 %v63, %v62
  %v65 = vmul.f32 0.5, %v64
  %v66 = vsub.f32 1.5, %v65
  %v67 = vmul.f32 %v62, %v66
  %vm68 = vweird.f32 %v51
  %vm69 = vweird.f32 %v62
  %vm70 = vmor %vm68, %vm69
  %v71 = vsel %vm70, %v62, %v67
  %v72 = vmul.f32 %v38, %v61
  %v73 = vmul.f32 %v39, %v71
  %v74 = vld [vmem:[%s1] sm:$0x1]
  %v76 = vperm.slane %v74, 0
  %v78 = vmul.f32 %v72, %v76
  %v79 = vmul.f32 %v73, %v76
  %v80 = vld [vmem:[%s2] sm:$0x1]
  %v82 = vperm.slane %v80, 0
  %v84 = vadd.f32 %v78, %v82
  %v85 = vadd.f32 %v79, %v82
  %v86 = vld [vmem:[%s3] sm:$0xff]
  %v87 = vld [vmem:[%s3 + $0x8] sm:$0xff]
  %v88 = vld [vmem:[%s3 + $0x10] sm:$0xff]
  %v89 = vld [vmem:[%s3 + $0x18] sm:$0xff]
  %v90 = vld [vmem:[%s4] sm:$0x1]
  %v92 = vperm.slane %v90, 0
  %v95 = vsel %vm22, %v84, 0
  %v98 = vsel %vm22, %v85, 0
  %100 = vmatpush.msra.mxu0 0.0
  %101 = vmatpush.msra.mxu0 0.0
  %102 = vmatpush.msra.mxu0 0.0
  %103 = vmatpush.msra.mxu0 0.0
  %104 = vmatpush.msra.mxu0 0.0
  %105 = vmatpush.msra.mxu0 0.0
  %106 = vmatpush.msra.mxu0 0.0
  %107 = vmatpush.msra.mxu0 0.0
  %108 = vmatpush.msra.mxu0 0.0
  %109 = vmatpush.msra.mxu0 0.0
  %110 = vmatpush.msra.mxu0 0.0
  %111 = vmatpush.msra.mxu0 0.0
  %112 = vmatpush.msra.mxu0 %v89
  %113 = vmatpush.msra.mxu0 %v88
  %114 = vmatpush.msra.mxu0 %v87
  %115 = vmatpush.msra.mxu0 %v86
  %116 = vmatmul.f32.gmra.mxu0 %v95
  %v117 = vpop.f32.mrf.mxu0
  %v118 = vadd.f32 %v92, %v117
  %119 = vmatmul.f32.gmra.mxu0 %v98
  %v120 = vpop.f32.mrf.mxu0
  %v121 = vadd.f32 %v92, %v120
  %122 = vdwg.mxu0
  %vm123 = vcmask 785408
  %124 = vst.msk [vmem:[%s5] sm:$0xff] %vm123, %v118
  %125 = vst.msk [vmem:[%s5 + $0x8] sm:$0xff] %vm123, %v121
  // Predicated region
  $region22: #{transformer_forward.9} parent=0 // pred_check
    _
  $region23: #{transformer_forward.9} parent=0 // pred_check_branch
    %127 = sbr.rel (0) target = $region25
  $region24: #{transformer_forward.9} parent=0 // pred_region
    _
  $region25: #{transformer_forward.9} parent=0 // pred_fallthru
    _
  // Predicated region
  $region26: #{transformer_forward.9} parent=0 // pred_check
    _
  $region27: #{transformer_forward.9} parent=0 // pred_check_branch
    %129 = sbr.rel (0) target = $region29
  $region28: #{transformer_forward.9} parent=0 // pred_region
    _
  $region29: #{transformer_forward.9} parent=0 // pred_fallthru
    _

// kernel: transformer_forward.11
$region0: #{transformer_forward.11}
  #allocation0 [shape = 'u32[]', space=smem, size = 0x4, offset = 0x4, fixed_abs, tag = 'smem constant byte address 0x4 - core index']
  #allocation1 [shape = 'u32[72,128]{1,0:T(1,128)}', space=vmem, size = 0x9000, scoped, tag = 'internal scratch']
  %s0 = inlined_call_operand.vmem [shape: f32[16,32], index: 0, kind: input, shape index: {}]
  %s1 = inlined_call_operand.vmem [shape: f32[1,32], index: 1, kind: input, shape index: {}]
  %s2 = inlined_call_operand.vmem [shape: f32[1,32], index: 2, kind: input, shape index: {}]
  %s3 = inlined_call_operand.vmem [shape: f32[32,64], index: 3, kind: input, shape index: {}]
  %s4 = inlined_call_operand.vmem [shape: f32[1,64], index: 4, kind: input, shape index: {}]
  %s5 = inlined_call_operand.vmem [shape: f32[16,64], index: 5, kind: output, shape index: {}]
  %s6 = sld [smem:[#allocation0]]
  $region30: #{transformer_forward.11} parent=0
    _
  %s8 = ssub.s32 1, %s6
  %s9 = scalar_select 0, %s8, %s6
  // Predicated region
  $region2: #{transformer_forward.11} parent=0 // pred_check
    _
  $region3: #{transformer_forward.11} parent=0 // pred_check_branch
    %11 = sbr.rel (0) target = $region5
  $region4: #{transformer_forward.11} parent=0 // pred_region
    _
  $region5: #{transformer_forward.11} parent=0 // pred_fallthru
    _
  // Predicated region
  $region6: #{transformer_forward.11} parent=0 // pred_check
    _
  $region7: #{transformer_forward.11} parent=0 // pred_check_branch
    %13 = sbr.rel (0) target = $region9
  $region8: #{transformer_forward.11} parent=0 // pred_region
    _
  $region9: #{transformer_forward.11} parent=0 // pred_fallthru
    _
  // Predicated region
  $region10: #{transformer_forward.11} parent=0 // pred_check
    _
  $region11: #{transformer_forward.11} parent=0 // pred_check_branch
    %15 = sbr.rel (0) target = $region13
  $region12: #{transformer_forward.11} parent=0 // pred_region
    _
  $region13: #{transformer_forward.11} parent=0 // pred_fallthru
    _
  // Predicated region
  $region14: #{transformer_forward.11} parent=0 // pred_check
    _
  $region15: #{transformer_forward.11} parent=0 // pred_check_branch
    %17 = sbr.rel (0) target = $region17
  $region16: #{transformer_forward.11} parent=0 // pred_region
    _
  $region17: #{transformer_forward.11} parent=0 // pred_fallthru
    _
  // Predicated region
  $region18: #{transformer_forward.11} parent=0 // pred_check
    _
  $region19: #{transformer_forward.11} parent=0 // pred_check_branch
    %19 = sbr.rel (0) target = $region21
  $region20: #{transformer_forward.11} parent=0 // pred_region
    _
  $region21: #{transformer_forward.11} parent=0 // pred_fallthru
    _
  %v20 = vld [vmem:[%s0] sm:$0xff]
  %v21 = vld [vmem:[%s0 + $0x8] sm:$0xff]
  %vm22 = vcmask 261120
  %v23 = vsel %vm22, %v20, 0.0
  %24 = vadd.xlane.f32.xlu0 %v23
  %v25 = vpop.xlane.xlu0 %24
  %v26 = vsel %vm22, %v21, 0.0
  %27 = vadd.xlane.f32.xlu0 %v26
  %v28 = vpop.xlane.xlu0 %27
  %v29 = vrcp.pop 32.0
  %v30 = vmul.f32 32.0, %v29
  %v31 = vsub.f32 1.0, %v30
  %v32 = vmul.f32 %v29, %v31
  %v33 = vadd.f32 %v29, %v32
  %vm34 = vweird.f32 %v29
  %v35 = vsel %vm34, %v29, %v33
  %v36 = vmul.f32 %v25, %v35
  %v37 = vmul.f32 %v28, %v35
  %v38 = vsub.f32 %v20, %v36
  %v39 = vsub.f32 %v21, %v37
  %v40 = vmul.f32 %v38, %v38
  %v41 = vmul.f32 %v39, %v39
  %v42 = vsel %vm22, %v40, 0.0
  %43 = vadd.xlane.f32.xlu0 %v42
  %v44 = vpop.xlane.xlu0 %43
  %v45 = vsel %vm22, %v41, 0.0
  %46 = vadd.xlane.f32.xlu0 %v45
  %v47 = vpop.xlane.xlu0 %46
  %v48 = vmul.f32 %v44, %v35
  %v49 = vmul.f32 %v47, %v35
  %v50 = vadd.f32 %v48, 1e-05
  %v51 = vadd.f32 %v49, 1e-05
  %v52 = vrsqrt.pop %v50
  %v53 = vmul.f32 %v52, %v50
  %v54 = vmul.f32 %v53, %v52
  %v55 = vmul.f32 0.5, %v54
  %v56 = vsub.f32 1.5, %v55
  %v57 = vmul.f32 %v52, %v56
  %vm58 = vweird.f32 %v50
  %vm59 = vweird.f32 %v52
  %vm60 = vmor %vm58, %vm59
  %v61 = vsel %vm60, %v52, %v57
  %v62 = vrsqrt.pop %v51
  %v63 = vmul.f32 %v62, %v51
  %v64 = vmul.f32 %v63, %v62
  %v65 = vmul.f32 0.5, %v64
  %v66 = vsub.f32 1.5, %v65
  %v67 = vmul.f32 %v62, %v66
  %vm68 = vweird.f32 %v51
  %vm69 = vweird.f32 %v62
  %vm70 = vmor %vm68, %vm69
  %v71 = vsel %vm70, %v62, %v67
  %v72 = vmul.f32 %v38, %v61
  %v73 = vmul.f32 %v39, %v71
  %v74 = vld [vmem:[%s1] sm:$0x1]
  %v76 = vperm.slane %v74, 0
  %v78 = vmul.f32 %v72, %v76
  %v79 = vmul.f32 %v73, %v76
  %v80 = vld [vmem:[%s2] sm:$0x1]
  %v82 = vperm.slane %v80, 0
  %v84 = vadd.f32 %v78, %v82
  %v85 = vadd.f32 %v79, %v82
  %v86 = vld [vmem:[%s3] sm:$0xff]
  %v87 = vld [vmem:[%s3 + $0x8] sm:$0xff]
  %v88 = vld [vmem:[%s3 + $0x10] sm:$0xff]
  %v89 = vld [vmem:[%s3 + $0x18] sm:$0xff]
  %v90 = vld [vmem:[%s4] sm:$0x1]
  %v92 = vperm.slane %v90, 0
  %v95 = vsel %vm22, %v84, 0
  %v98 = vsel %vm22, %v85, 0
  %100 = vmatpush.msra.mxu0 0.0
  %101 = vmatpush.msra.mxu0 0.0
  %102 = vmatpush.msra.mxu0 0.0
  %103 = vmatpush.msra.mxu0 0.0
  %104 = vmatpush.msra.mxu0 0.0
  %105 = vmatpush.msra.mxu0 0.0
  %106 = vmatpush.msra.mxu0 0.0
  %107 = vmatpush.msra.mxu0 0.0
  %108 = vmatpush.msra.mxu0 0.0
  %109 = vmatpush.msra.mxu0 0.0
  %110 = vmatpush.msra.mxu0 0.0
  %111 = vmatpush.msra.mxu0 0.0
  %112 = vmatpush.msra.mxu0 %v89
  %113 = vmatpush.msra.mxu0 %v88
  %114 = vmatpush.msra.mxu0 %v87
  %115 = vmatpush.msra.mxu0 %v86
  %116 = vmatmul.f32.gmra.mxu0 %v95
  %v117 = vpop.f32.mrf.mxu0
  %v118 = vadd.f32 %v92, %v117
  %119 = vmatmul.f32.gmra.mxu0 %v98
  %v120 = vpop.f32.mrf.mxu0
  %v121 = vadd.f32 %v92, %v120
  %122 = vdwg.mxu0
  %v123 = vmax.f32 %v118, 0.0
  %v124 = vmax.f32 %v121, 0.0
  %vm125 = vcmask 523264
  %126 = vst.msk [vmem:[%s5] sm:$0xff] %vm125, %v123
  %127 = vst.msk [vmem:[%s5 + $0x8] sm:$0xff] %vm125, %v124
  // Predicated region
  $region22: #{transformer_forward.11} parent=0 // pred_check
    _
  $region23: #{transformer_forward.11} parent=0 // pred_check_branch
    %129 = sbr.rel (0) target = $region25
  $region24: #{transformer_forward.11} parent=0 // pred_region
    _
  $region25: #{transformer_forward.11} parent=0 // pred_fallthru
    _
  // Predicated region
  $region26: #{transformer_forward.11} parent=0 // pred_check
    _
  $region27: #{transformer_forward.11} parent=0 // pred_check_branch
    %131 = sbr.rel (0) target = $region29
  $region28: #{transformer_forward.11} parent=0 // pred_region
    _
  $region29: #{transformer_forward.11} parent=0 // pred_fallthru
    _

// kernel: transformer_forward.10
$region0: #{transformer_forward.10}
  #allocation0 [shape = 'u32[]', space=smem, size = 0x4, offset = 0x4, fixed_abs, tag = 'smem constant byte address 0x4 - core index']
  #allocation1 [shape = 'u32[72,128]{1,0:T(1,128)}', space=vmem, size = 0x9000, scoped, tag = 'internal scratch']
  #allocation2 [shape = 'f32[8,32]{1,0:T(8,128)}', space=vmem, size = 0x1000, scoped, tag = 'scratch operand']
  %s0 = inlined_call_operand.vmem [shape: f32[2,8,96], index: 0, kind: input, shape index: {}]
  %s1 = inlined_call_operand.vmem [shape: f32[32,32], index: 1, kind: input, shape index: {}]
  %s2 = inlined_call_operand.vmem [shape: f32[1,32], index: 2, kind: input, shape index: {}]
  %s3 = inlined_call_operand.vmem [shape: f32[2,8,32], index: 3, kind: input, shape index: {}]
  %s4 = inlined_call_operand.vmem [shape: f32[2,8,32], index: 4, kind: output, shape index: {}]
  %s5 = sld [smem:[#allocation0]]
  $region49: #{transformer_forward.10} parent=0
    _
  %s7 = ssub.s32 1, %s5
  %s8 = scalar_select 0, %s7, %s5
  loop: start=0, step=1, limit=4
  $region2: #{transformer_forward.10} parent=0 // loop_pre_header
    _
  $region3: #{transformer_forward.10} parent=0 // loop_header
    %s10 = sphi 0, %s14
    %p11 = scmp.ge.s32.totalorder %s10, 4
    %s20 = sphi 0, %s22
    %s23 = sphi 0, %s20
    %s24 = sphi 0, %s23
    %s40 = sphi 0, %s24
    %s44 = sphi 0, %s44
    %s46 = sphi 0, %s44
    %s47 = sphi 0, %s46
    %s61 = sphi 0, %s47
    %s65 = sphi 0, %s65
    %s67 = sphi 0, %s65
    %s68 = sphi 0, %s67
    %s82 = sphi 0, %s68
    %s88 = sphi 0, %s90
    %s91 = sphi 0, %s88
    %s92 = sphi 0, %s91
    %s108 = sphi 0, %s92
    %s114 = sphi 0, %s116
    %s117 = sphi 0, %s114
    %s118 = sphi 0, %s117
    %s134 = sphi 0, %s118
  $region4: #{transformer_forward.10} parent=0 // loop_header_branch
    %13 = sbr.rel (%p11) target = $region8
  $region5: #{transformer_forward.10} parent=0 // loop_body
    %s15 = ssub.s32 %s10, 1
    %s16 = ssub.s32 %s10, 2
    %s17 = sadd.s32 %s10, 1
    %s18 = ssub.s32 %s10, %s17
    %p19 = scmp.eq.s32.totalorder %s18, 0
    %s21 = sadd.s32 %s20, 1
    %s22 = scalar_select %p19, %s20, %s21
    %p25 = pneg %p19
    %p26 = scmp.eq.s32.totalorder %s10, 1
    %p27 = por %p25, %p26
    %p28 = scmp.ne.s32.totalorder %s20, %s23
    %p29 = scmp.eq.s32.totalorder %s10, 0
    %p30 = por %p28, %p29
    %p31 = scmp.ne.s32.totalorder %s20, %s23
    %p32 = scmp.eq.s32.totalorder %s15, 1
    %p33 = por %p31, %p32
    %p34 = scmp.ne.s32.totalorder %s23, %s24
    %p35 = scmp.eq.s32.totalorder %s15, 0
    %p36 = por %p34, %p35
    %p37 = scmp.ne.s32.totalorder %s23, %s24
    %p38 = scmp.eq.s32.totalorder %s16, 1
    %p39 = por %p37, %p38
    %p41 = scmp.ne.s32.totalorder %s24, %s40
    %p42 = scmp.eq.s32.totalorder %s16, 0
    %p43 = por %p41, %p42
    %s45 = sadd.s32 %s44, 1
    %p48 = scmp.eq.s32.totalorder %s10, 1
    %p49 = scmp.ne.s32.totalorder %s44, %s46
    %p50 = scmp.eq.s32.totalorder %s10, 0
    %p51 = por %p49, %p50
    %p52 = scmp.ne.s32.totalorder %s44, %s46
    %p53 = scmp.eq.s32.totalorder %s15, 1
    %p54 = por %p52, %p53
    %p55 = scmp.ne.s32.totalorder %s46, %s47
    %p56 = scmp.eq.s32.totalorder %s15, 0
    %p57 = por %p55, %p56
    %p58 = scmp.ne.s32.totalorder %s46, %s47
    %p59 = scmp.eq.s32.totalorder %s16, 1
    %p60 = por %p58, %p59
    %p62 = scmp.ne.s32.totalorder %s47, %s61
    %p63 = scmp.eq.s32.totalorder %s16, 0
    %p64 = por %p62, %p63
    %s66 = sadd.s32 %s65, 1
    %p69 = scmp.eq.s32.totalorder %s10, 1
    %p70 = scmp.ne.s32.totalorder %s65, %s67
    %p71 = scmp.eq.s32.totalorder %s10, 0
    %p72 = por %p70, %p71
    %p73 = scmp.ne.s32.totalorder %s65, %s67
    %p74 = scmp.eq.s32.totalorder %s15, 1
    %p75 = por %p73, %p74
    %p76 = scmp.ne.s32.totalorder %s67, %s68
    %p77 = scmp.eq.s32.totalorder %s15, 0
    %p78 = por %p76, %p77
    %p79 = scmp.ne.s32.totalorder %s67, %s68
    %p80 = scmp.eq.s32.totalorder %s16, 1
    %p81 = por %p79, %p80
    %p83 = scmp.ne.s32.totalorder %s68, %s82
    %p84 = scmp.eq.s32.totalorder %s16, 0
    %p85 = por %p83, %p84
    %s86 = ssub.s32 %s10, %s17
    %p87 = scmp.eq.s32.totalorder %s86, 0
    %s89 = sadd.s32 %s88, 1
    %s90 = scalar_select %p87, %s88, %s89
    %p93 = pneg %p87
    %p94 = scmp.eq.s32.totalorder %s10, 1
    %p95 = por %p93, %p94
    %p96 = scmp.ne.s32.totalorder %s88, %s91
    %p97 = scmp.eq.s32.totalorder %s10, 0
    %p98 = por %p96, %p97
    %p99 = scmp.ne.s32.totalorder %s88, %s91
    %p100 = scmp.eq.s32.totalorder %s15, 1
    %p101 = por %p99, %p100
    %p102 = scmp.ne.s32.totalorder %s91, %s92
    %p103 = scmp.eq.s32.totalorder %s15, 0
    %p104 = por %p102, %p103
    %p105 = scmp.ne.s32.totalorder %s91, %s92
    %p106 = scmp.eq.s32.totalorder %s16, 1
    %p107 = por %p105, %p106
    %p109 = scmp.ne.s32.totalorder %s92, %s108
    %p110 = scmp.eq.s32.totalorder %s16, 0
    %p111 = por %p109, %p110
    %s112 = ssub.s32 %s10, %s17
    %p113 = scmp.eq.s32.totalorder %s112, 0
    %s115 = sadd.s32 %s114, 1
    %s116 = scalar_select %p113, %s114, %s115
    %p119 = pneg %p113
    %p120 = scmp.eq.s32.totalorder %s10, 1
    %p121 = por %p119, %p120
    %p122 = scmp.ne.s32.totalorder %s114, %s117
    %p123 = scmp.eq.s32.totalorder %s10, 0
    %p124 = por %p122, %p123
    %p125 = scmp.ne.s32.totalorder %s114, %s117
    %p126 = scmp.eq.s32.totalorder %s15, 1
    %p127 = por %p125, %p126
    %p128 = scmp.ne.s32.totalorder %s117, %s118
    %p129 = scmp.eq.s32.totalorder %s15, 0
    %p130 = por %p128, %p129
    %p131 = scmp.ne.s32.totalorder %s117, %s118
    %p132 = scmp.eq.s32.totalorder %s16, 1
    %p133 = por %p131, %p132
    %p135 = scmp.ne.s32.totalorder %s118, %s134
    %p136 = scmp.eq.s32.totalorder %s16, 0
    %p137 = por %p135, %p136
    %p138 = scmp.le.s32.totalorder 1, %s10
    %p139 = scmp.lt.s32.totalorder %s10, 3
    %p140 = pnand %p138, %p139
    %p141 = pneg %p140
    // Predicated region
    $region9: #{transformer_forward.10} parent=5 // pred_check
      _
    $region10: #{transformer_forward.10} parent=5 // pred_check_branch
      %143 = sbr.rel (%p140) target = $region12
    $region11: #{transformer_forward.10} parent=5 // pred_region
      %s144 = ssub.s32 %s10, 1
      // Predicated region
      $region13: #{transformer_forward.10} parent=11 // pred_check
        %p145 = pneg %p57
      $region14: #{transformer_forward.10} parent=11 // pred_check_branch
        %147 = sbr.rel (%p145) target = $region16
      $region15: #{transformer_forward.10} parent=11 // pred_region
        _
      $region16: #{transformer_forward.10} parent=11 // pred_fallthru
        _
      // Predicated region
      $region17: #{transformer_forward.10} parent=11 // pred_check
        %p148 = pneg %p78
      $region18: #{transformer_forward.10} parent=11 // pred_check_branch
        %150 = sbr.rel (%p148) target = $region20
      $region19: #{transformer_forward.10} parent=11 // pred_region
        _
      $region20: #{transformer_forward.10} parent=11 // pred_fallthru
        _
    $region12: #{transformer_forward.10} parent=5 // pred_fallthru
      _
    %p151 = scmp.lt.s32.totalorder %s10, 2
    // Predicated region
    $region21: #{transformer_forward.10} parent=5 // pred_check
      %p152 = pneg %p151
    $region22: #{transformer_forward.10} parent=5 // pred_check_branch
      %154 = sbr.rel (%p152) target = $region24
    $region23: #{transformer_forward.10} parent=5 // pred_region
      // Predicated region
      $region25: #{transformer_forward.10} parent=23 // pred_check
        %p155 = pneg %p30
      $region26: #{transformer_forward.10} parent=23 // pred_check_branch
        %157 = sbr.rel (%p155) target = $region28
      $region27: #{transformer_forward.10} parent=23 // pred_region
        %p158 = scmp.lt.s32.totalorder %s10, 1
        %s159 = scalar_select %p158, %s10, 1
        %s160 = smul.addr %s159, 8
        %s161 = scalar_lea.vmem %s0, %s160
      $region28: #{transformer_forward.10} parent=23 // pred_fallthru
        _
      // Predicated region
      $region29: #{transformer_forward.10} parent=23 // pred_check
        %p162 = pneg %p98
      $region30: #{transformer_forward.10} parent=23 // pred_check_branch
        %164 = sbr.rel (%p162) target = $region32
      $region31: #{transformer_forward.10} parent=23 // pred_region
        %p165 = scmp.lt.s32.totalorder %s10, 1
        %s166 = scalar_select %p165, %s10, 1
        %s167 = smul.addr %s166, 8
        %s168 = scalar_lea.vmem %s3, %s167
      $region32: #{transformer_forward.10} parent=23 // pred_fallthru
        _
    $region24: #{transformer_forward.10} parent=5 // pred_fallthru
      _
    %p169 = scmp.le.s32.totalorder 1, %s10
    %p170 = scmp.lt.s32.totalorder %s10, 3
    %p171 = pnand %p169, %p170
    %p172 = pneg %p171
    // Predicated region
    $region33: #{transformer_forward.10} parent=5 // pred_check
      _
    $region34: #{transformer_forward.10} parent=5 // pred_check_branch
      %174 = sbr.rel (%p171) target = $region36
    $region35: #{transformer_forward.10} parent=5 // pred_region
      %s175 = ssub.s32 %s10, 1
      %p176 = scmp.lt.s32.totalorder %s15, 1
      %s177 = scalar_select %p176, %s15, 1
      %s178 = smul.addr %s177, 8
      %s179 = scalar_lea.vmem %s0, %s178
      %p180 = pneg %p36
      %p181 = pneg %p33
      %p182 = pneg %p57
      %p183 = pneg %p54
      %p184 = pneg %p78
      %p185 = pneg %p75
      %p186 = scmp.lt.s32.totalorder %s15, 1
      %s187 = scalar_select %p186, %s15, 1
      %s188 = smul.addr %s187, 8
      %s189 = scalar_lea.vmem %s3, %s188
      %p190 = pneg %p104
      %p191 = pneg %p101
      %p192 = pneg %p130
      %p193 = pneg %p127
      %p194 = scmp.lt.s32.totalorder %s15, 1
      %s195 = scalar_select %p194, %s15, 1
      %s196 = smul.addr %s195, 8
      %s197 = scalar_lea.vmem %s4, %s196
      %p198 = scmp.lt.s32.totalorder %s15, 1
      %s199 = scalar_select %p198, %s15, 1
      %s200 = smul.addr %s199, 8
      %s201 = scalar_lea.vmem %s0, %s200
      %p202 = scmp.lt.s32.totalorder %s15, 1
      %s203 = scalar_select %p202, %s15, 1
      %s204 = smul.addr %s203, 8
      %s205 = scalar_lea.vmem %s3, %s204
      %p206 = scmp.lt.s32.totalorder %s15, 1
      %s207 = scalar_select %p206, %s15, 1
      %s208 = smul.addr %s207, 8
      %s209 = scalar_lea.vmem %s4, %s208
      %v210 = vld [vmem:[%s201] sm:$0xff]
      %v211 = vlaneseq
      %v212 = vshrl.u32 %v211, 7
      %v213 = vlaneseq
      %v214 = vand.u32 %v213, 127
      %vm215 = vcmp.le.s32.totalorder %v214, %v212
      %217 = vrot.lane.b32.xlu0 %v210, 96
      %v218 = vpop.permute.xlu0 %217
      %vm219 = vcmask 64512
      %v220 = vsel %vm219, %v210, 0
      %v222 = vsel %vm219, %v218, 0
      %224 = vmatpush.xpose.msra.mxu0 0.0
      %225 = vmatpush.xpose.msra.mxu0 0.0
      %226 = vmatpush.xpose.msra.mxu0 0.0
      %227 = vmatpush.xpose.msra.mxu0 0.0
      %228 = vmatpush.xpose.msra.mxu0 0.0
      %229 = vmatpush.xpose.msra.mxu0 0.0
      %230 = vmatpush.xpose.msra.mxu0 0.0
      %231 = vmatpush.xpose.msra.mxu0 0.0
      %232 = vmatpush.xpose.msra.mxu0 0.0
      %233 = vmatpush.xpose.msra.mxu0 0.0
      %234 = vmatpush.xpose.msra.mxu0 0.0
      %235 = vmatpush.xpose.msra.mxu0 0.0
      %236 = vmatpush.xpose.msra.mxu0 0.0
      %237 = vmatpush.xpose.msra.mxu0 0.0
      %238 = vmatpush.xpose.msra.mxu0 0.0
      %239 = vmatpush.xpose.msra.mxu0 %v222
      %240 = vmatmul.f32.gmra.mxu0 %v220
      %v241 = vpop.f32.mrf.mxu0
      %v242 = vadd.f32 0.0, %v241
      %243 = vdwg.mxu0
      %v244 = vmul.f32 %v242, 0.35355338
      %v245 = vsel %vm215, %v244, -1e+30
      %v246 = vsel %vm219, %v245, -inf
      %247 = vmax.xlane.f32.xlu0 %v246
      %v248 = vpop.xlane.xlu0 %247
      %v249 = vsub.f32 %v245, %v248
      %v250 = vmul.f32 %v249, 1.442695
      %v251 = vpow.pop %v250
      %v252 = vsel %vm219, %v251, 0.0
      %253 = vadd.xlane.f32.xlu0 %v252
      %v254 = vpop.xlane.xlu0 %253
      %v255 = vrcp.pop %v254
      %v256 = vmul.f32 %v254, %v255
      %v257 = vsub.f32 1.0, %v256
      %v258 = vmul.f32 %v255, %v257
      %v259 = vadd.f32 %v255, %v258
      %vm260 = vweird.f32 %v254
      %vm261 = vweird.f32 %v255
      %vm262 = vmor %vm260, %vm261
      %v263 = vsel %vm262, %v255, %v259
      %v264 = vand.u32 2147483647, %v254
      %vm265 = vcmp.eq.f32.partialorder %v264, 8.507059e+37
      %v266 = vand.u32 %v254, 2147483648
      %v267 = vor.u32 1.1754944e-38, %v266
      %v268 = vsel %vm265, %v267, %v263
      %v269 = vmul.f32 %v251, %v268
      %270 = vrot.lane.b32.xlu0 %v210, 64
      %v271 = vpop.permute.xlu0 %270
      %v274 = vsel %vm219, %v269, 0
      %276 = vmatpush.msra.mxu0 0.0
      %277 = vmatpush.msra.mxu0 0.0
      %278 = vmatpush.msra.mxu0 0.0
      %279 = vmatpush.msra.mxu0 0.0
      %280 = vmatpush.msra.mxu0 0.0
      %281 = vmatpush.msra.mxu0 0.0
      %282 = vmatpush.msra.mxu0 0.0
      %283 = vmatpush.msra.mxu0 0.0
      %284 = vmatpush.msra.mxu0 0.0
      %285 = vmatpush.msra.mxu0 0.0
      %286 = vmatpush.msra.mxu0 0.0
      %287 = vmatpush.msra.mxu0 0.0
      %288 = vmatpush.msra.mxu0 0.0
      %289 = vmatpush.msra.mxu0 0.0
      %290 = vmatpush.msra.mxu0 0.0
      %291 = vmatpush.msra.mxu0 %v271
      %292 = vmatmul.f32.gmra.mxu0 %v274
      %v293 = vpop.f32.mrf.mxu0
      %v294 = vadd.f32 0.0, %v293
      %295 = vdwg.mxu0
      %296 = vst.msk [vmem:[#allocation2] sm:$0xff] %vm219, %v294
      %297 = vrot.lane.b32.xlu0 %v210, 120
      %v298 = vpop.permute.xlu0 %297
      %299 = vrot.lane.b32.xlu0 %v210, 88
      %v300 = vpop.permute.xlu0 %299
      %v301 = vsel %vm219, %v298, 0
      %v303 = vsel %vm219, %v300, 0
      %305 = vmatpush.xpose.msra.mxu0 0.0
      %306 = vmatpush.xpose.msra.mxu0 0.0
      %307 = vmatpush.xpose.msra.mxu0 0.0
      %308 = vmatpush.xpose.msra.mxu0 0.0
      %309 = vmatpush.xpose.msra.mxu0 0.0
      %310 = vmatpush.xpose.msra.mxu0 0.0
      %311 = vmatpush.xpose.msra.mxu0 0.0
      %312 = vmatpush.xpose.msra.mxu0 0.0
      %313 = vmatpush.xpose.msra.mxu0 0.0
      %314 = vmatpush.xpose.msra.mxu0 0.0
      %315 = vmatpush.xpose.msra.mxu0 0.0
      %316 = vmatpush.xpose.msra.mxu0 0.0
      %317 = vmatpush.xpose.msra.mxu0 0.0
      %318 = vmatpush.xpose.msra.mxu0 0.0
      %319 = vmatpush.xpose.msra.mxu0 0.0
      %320 = vmatpush.xpose.msra.mxu0 %v303
      %321 = vmatmul.f32.gmra.mxu0 %v301
      %v322 = vpop.f32.mrf.mxu0
      %v323 = vadd.f32 0.0, %v322
      %324 = vdwg.mxu0
      %v325 = vmul.f32 %v323, 0.35355338
      %v326 = vsel %vm215, %v325, -1e+30
      %v327 = vsel %vm219, %v326, -inf
      %328 = vmax.xlane.f32.xlu0 %v327
      %v329 = vpop.xlane.xlu0 %328
      %v330 = vsub.f32 %v326, %v329
      %v331 = vmul.f32 %v330, 1.442695
      %v332 = vpow.pop %v331
      %v333 = vsel %vm219, %v332, 0.0
      %334 = vadd.xlane.f32.xlu0 %v333
      %v335 = vpop.xlane.xlu0 %334
      %v336 = vrcp.pop %v335
      %v337 = vmul.f32 %v335, %v336
      %v338 = vsub.f32 1.0, %v337
      %v339 = vmul.f32 %v336, %v338
      %v340 = vadd.f32 %v336, %v339
      %vm341 = vweird.f32 %v335
      %vm342 = vweird.f32 %v336
      %vm343 = vmor %vm341, %vm342
      %v344 = vsel %vm343, %v336, %v340
      %v345 = vand.u32 2147483647, %v335
      %vm346 = vcmp.eq.f32.partialorder %v345, 8.507059e+37
      %v347 = vand.u32 %v335, 2147483648
      %v348 = vor.u32 1.1754944e-38, %v347
      %v349 = vsel %vm346, %v348, %v344
      %v350 = vmul.f32 %v332, %v349
      %351 = vrot.lane.b32.xlu0 %v210, 56
      %v352 = vpop.permute.xlu0 %351
      %v355 = vsel %vm219, %v350, 0
      %357 = vmatpush.msra.mxu0 0.0
      %358 = vmatpush.msra.mxu0 0.0
      %359 = vmatpush.msra.mxu0 0.0
      %360 = vmatpush.msra.mxu0 0.0
      %361 = vmatpush.msra.mxu0 0.0
      %362 = vmatpush.msra.mxu0 0.0
      %363 = vmatpush.msra.mxu0 0.0
      %364 = vmatpush.msra.mxu0 0.0
      %365 = vmatpush.msra.mxu0 0.0
      %366 = vmatpush.msra.mxu0 0.0
      %367 = vmatpush.msra.mxu0 0.0
      %368 = vmatpush.msra.mxu0 0.0
      %369 = vmatpush.msra.mxu0 0.0
      %370 = vmatpush.msra.mxu0 0.0
      %371 = vmatpush.msra.mxu0 0.0
      %372 = vmatpush.msra.mxu0 %v352
      %373 = vmatmul.f32.gmra.mxu0 %v355
      %v374 = vpop.f32.mrf.mxu0
      %v375 = vadd.f32 0.0, %v374
      %376 = vdwg.mxu0
      %378 = vrot.lane.b32.xlu0 %v375, 8
      %v379 = vpop.permute.xlu0 %378
      %vm381 = vcmask 130112
      %382 = vst.msk [vmem:[#allocation2] sm:$0xff] %vm381, %v379
      %383 = vrot.lane.b32.xlu0 %v210, 112
      %v384 = vpop.permute.xlu0 %383
      %385 = vrot.lane.b32.xlu0 %v210, 80
      %v386 = vpop.permute.xlu0 %385
      %v387 = vsel %vm219, %v384, 0
      %v389 = vsel %vm219, %v386, 0
      %391 = vmatpush.xpose.msra.mxu0 0.0
      %392 = vmatpush.xpose.msra.mxu0 0.0
      %393 = vmatpush.xpose.msra.mxu0 0.0
      %394 = vmatpush.xpose.msra.mxu0 0.0
      %395 = vmatpush.xpose.msra.mxu0 0.0
      %396 = vmatpush.xpose.msra.mxu0 0.0
      %397 = vmatpush.xpose.msra.mxu0 0.0
      %398 = vmatpush.xpose.msra.mxu0 0.0
      %399 = vmatpush.xpose.msra.mxu0 0.0
      %400 = vmatpush.xpose.msra.mxu0 0.0
      %401 = vmatpush.xpose.msra.mxu0 0.0
      %402 = vmatpush.xpose.msra.mxu0 0.0
      %403 = vmatpush.xpose.msra.mxu0 0.0
      %404 = vmatpush.xpose.msra.mxu0 0.0
      %405 = vmatpush.xpose.msra.mxu0 0.0
      %406 = vmatpush.xpose.msra.mxu0 %v389
      %407 = vmatmul.f32.gmra.mxu0 %v387
      %v408 = vpop.f32.mrf.mxu0
      %v409 = vadd.f32 0.0, %v408
      %410 = vdwg.mxu0
      %v411 = vmul.f32 %v409, 0.35355338
      %v412 = vsel %vm215, %v411, -1e+30
      %v413 = vsel %vm219, %v412, -inf
      %414 = vmax.xlane.f32.xlu0 %v413
      %v415 = vpop.xlane.xlu0 %414
      %v416 = vsub.f32 %v412, %v415
      %v417 = vmul.f32 %v416, 1.442695
      %v418 = vpow.pop %v417
      %v419 = vsel %vm219, %v418, 0.0
      %420 = vadd.xlane.f32.xlu0 %v419
      %v421 = vpop.xlane.xlu0 %420
      %v422 = vrcp.pop %v421
      %v423 = vmul.f32 %v421, %v422
      %v424 = vsub.f32 1.0, %v423
      %v425 = vmul.f32 %v422, %v424
      %v426 = vadd.f32 %v422, %v425
      %vm427 = vweird.f32 %v421
      %vm428 = vweird.f32 %v422
      %vm429 = vmor %vm427, %vm428
      %v430 = vsel %vm429, %v422, %v426
      %v431 = vand.u32 2147483647, %v421
      %vm432 = vcmp.eq.f32.partialorder %v431, 8.507059e+37
      %v433 = vand.u32 %v421, 2147483648
      %v434 = vor.u32 1.1754944e-38, %v433
      %v435 = vsel %vm432, %v434, %v430
      %v436 = vmul.f32 %v418, %v435
      %437 = vrot.lane.b32.xlu0 %v210, 48
      %v438 = vpop.permute.xlu0 %437
      %v441 = vsel %vm219, %v436, 0
      %443 = vmatpush.msra.mxu0 0.0
      %444 = vmatpush.msra.mxu0 0.0
      %445 = vmatpush.msra.mxu0 0.0
      %446 = vmatpush.msra.mxu0 0.0
      %447 = vmatpush.msra.mxu0 0.0
      %448 = vmatpush.msra.mxu0 0.0
      %449 = vmatpush.msra.mxu0 0.0
      %450 = vmatpush.msra.mxu0 0.0
      %451 = vmatpush.msra.mxu0 0.0
      %452 = vmatpush.msra.mxu0 0.0
      %453 = vmatpush.msra.mxu0 0.0
      %454 = vmatpush.msra.mxu0 0.0
      %455 = vmatpush.msra.mxu0 0.0
      %456 = vmatpush.msra.mxu0 0.0
      %457 = vmatpush.msra.mxu0 0.0
      %458 = vmatpush.msra.mxu0 %v438
      %459 = vmatmul.f32.gmra.mxu0 %v441
      %v460 = vpop.f32.mrf.mxu0
      %v461 = vadd.f32 0.0, %v460
      %462 = vdwg.mxu0
      %464 = vrot.lane.b32.xlu0 %v461, 16
      %v465 = vpop.permute.xlu0 %464
      %vm467 = vcmask 195712
      %468 = vst.msk [vmem:[#allocation2] sm:$0xff] %vm467, %v465
      %469 = vrot.lane.b32.xlu0 %v210, 104
      %v470 = vpop.permute.xlu0 %469
      %471 = vrot.lane.b32.xlu0 %v210, 72
      %v472 = vpop.permute.xlu0 %471
      %v473 = vsel %vm219, %v470, 0
      %v475 = vsel %vm219, %v472, 0
      %477 = vmatpush.xpose.msra.mxu0 0.0
      %478 = vmatpush.xpose.msra.mxu0 0.0
      %479 = vmatpush.xpose.msra.mxu0 0.0
      %480 = vmatpush.xpose.msra.mxu0 0.0
      %481 = vmatpush.xpose.msra.mxu0 0.0
      %482 = vmatpush.xpose.msra.mxu0 0.0
      %483 = vmatpush.xpose.msra.mxu0 0.0
      %484 = vmatpush.xpose.msra.mxu0 0.0
      %485 = vmatpush.xpose.msra.mxu0 0.0
      %486 = vmatpush.xpose.msra.mxu0 0.0
      %487 = vmatpush.xpose.msra.mxu0 0.0
      %488 = vmatpush.xpose.msra.mxu0 0.0
      %489 = vmatpush.xpose.msra.mxu0 0.0
      %490 = vmatpush.xpose.msra.mxu0 0.0
      %491 = vmatpush.xpose.msra.mxu0 0.0
      %492 = vmatpush.xpose.msra.mxu0 %v475
      %493 = vmatmul.f32.gmra.mxu0 %v473
      %v494 = vpop.f32.mrf.mxu0
      %v495 = vadd.f32 0.0, %v494
      %496 = vdwg.mxu0
      %v497 = vmul.f32 %v495, 0.35355338
      %v498 = vsel %vm215, %v497, -1e+30
      %v499 = vsel %vm219, %v498, -inf
      %500 = vmax.xlane.f32.xlu0 %v499
      %v501 = vpop.xlane.xlu0 %500
      %v502 = vsub.f32 %v498, %v501
      %v503 = vmul.f32 %v502, 1.442695
      %v504 = vpow.pop %v503
      %v505 = vsel %vm219, %v504, 0.0
      %506 = vadd.xlane.f32.xlu0 %v505
      %v507 = vpop.xlane.xlu0 %506
      %v508 = vrcp.pop %v507
      %v509 = vmul.f32 %v507, %v508
      %v510 = vsub.f32 1.0, %v509
      %v511 = vmul.f32 %v508, %v510
      %v512 = vadd.f32 %v508, %v511
      %vm513 = vweird.f32 %v507
      %vm514 = vweird.f32 %v508
      %vm515 = vmor %vm513, %vm514
      %v516 = vsel %vm515, %v508, %v512
      %v517 = vand.u32 2147483647, %v507
      %vm518 = vcmp.eq.f32.partialorder %v517, 8.507059e+37
      %v519 = vand.u32 %v507, 2147483648
      %v520 = vor.u32 1.1754944e-38, %v519
      %v521 = vsel %vm518, %v520, %v516
      %v522 = vmul.f32 %v504, %v521
      %523 = vrot.lane.b32.xlu0 %v210, 40
      %v524 = vpop.permute.xlu0 %523
      %v527 = vsel %vm219, %v522, 0
      %529 = vmatpush.msra.mxu0 0.0
      %530 = vmatpush.msra.mxu0 0.0
      %531 = vmatpush.msra.mxu0 0.0
      %532 = vmatpush.msra.mxu0 0.0
      %533 = vmatpush.msra.mxu0 0.0
      %534 = vmatpush.msra.mxu0 0.0
      %535 = vmatpush.msra.mxu0 0.0
      %536 = vmatpush.msra.mxu0 0.0
      %537 = vmatpush.msra.mxu0 0.0
      %538 = vmatpush.msra.mxu0 0.0
      %539 = vmatpush.msra.mxu0 0.0
      %540 = vmatpush.msra.mxu0 0.0
      %541 = vmatpush.msra.mxu0 0.0
      %542 = vmatpush.msra.mxu0 0.0
      %543 = vmatpush.msra.mxu0 0.0
      %544 = vmatpush.msra.mxu0 %v524
      %545 = vmatmul.f32.gmra.mxu0 %v527
      %v546 = vpop.f32.mrf.mxu0
      %v547 = vadd.f32 0.0, %v546
      %548 = vdwg.mxu0
      %550 = vrot.lane.b32.xlu0 %v547, 24
      %v551 = vpop.permute.xlu0 %550
      %vm553 = vcmask 261312
      %554 = vst.msk [vmem:[#allocation2] sm:$0xff] %vm553, %v551
      %v555 = vld [vmem:[#allocation2] sm:$0xff]
      %v556 = vld [vmem:[%s1] sm:$0xff]
      %v557 = vld [vmem:[%s1 + $0x8] sm:$0xff]
      %v558 = vld [vmem:[%s1 + $0x10] sm:$0xff]
      %v559 = vld [vmem:[%s1 + $0x18] sm:$0xff]
      %v560 = vld [vmem:[%s2] sm:$0x1]
      %v562 = vperm.slane %v560, 0
      %vm564 = vcmask 261120
      %v566 = vsel %vm564, %v555, 0
      %568 = vmatpush.msra.mxu0 0.0
      %569 = vmatpush.msra.mxu0 0.0
      %570 = vmatpush.msra.mxu0 0.0
      %571 = vmatpush.msra.mxu0 0.0
      %572 = vmatpush.msra.mxu0 0.0
      %573 = vmatpush.msra.mxu0 0.0
      %574 = vmatpush.msra.mxu0 0.0
      %575 = vmatpush.msra.mxu0 0.0
      %576 = vmatpush.msra.mxu0 0.0
      %577 = vmatpush.msra.mxu0 0.0
      %578 = vmatpush.msra.mxu0 0.0
      %579 = vmatpush.msra.mxu0 0.0
      %580 = vmatpush.msra.mxu0 %v559
      %581 = vmatpush.msra.mxu0 %v558
      %582 = vmatpush.msra.mxu0 %v557
      %583 = vmatpush.msra.mxu0 %v556
      %584 = vmatmul.f32.gmra.mxu0 %v566
      %v585 = vpop.f32.mrf.mxu0
      %v586 = vadd.f32 %v562, %v585
      %587 = vdwg.mxu0
      %v588 = vld [vmem:[%s205] sm:$0xff]
      %v589 = vadd.f32 %v586, %v588
      %590 = vst.msk [vmem:[%s209] sm:$0xff] %vm564, %v589
      %p591 = scmp.lt.s32.totalorder %s15, 1
      %s592 = scalar_select %p591, %s15, 1
      %s593 = smul.addr %s592, 8
      %s594 = scalar_lea.vmem %s4, %s593
      // Predicated region
      $region37: #{transformer_forward.10} parent=35 // pred_check
        %p595 = pneg %p127
      $region38: #{transformer_forward.10} parent=35 // pred_check_branch
        %597 = sbr.rel (%p595) target = $region40
      $region39: #{transformer_forward.10} parent=35 // pred_region
        _
      $region40: #{transformer_forward.10} parent=35 // pred_fallthru
        _
    $region36: #{transformer_forward.10} parent=5 // pred_fallthru
      _
    %p598 = scmp.le.s32.totalorder 2, %s10
    // Predicated region
    $region41: #{transformer_forward.10} parent=5 // pred_check
      %p599 = pneg %p598
    $region42: #{transformer_forward.10} parent=5 // pred_check_branch
      %601 = sbr.rel (%p599) target = $region44
    $region43: #{transformer_forward.10} parent=5 // pred_region
      %s602 = ssub.s32 %s10, 2
      // Predicated region
      $region45: #{transformer_forward.10} parent=43 // pred_check
        %p603 = pneg %p133
      $region46: #{transformer_forward.10} parent=43 // pred_check_branch
        %605 = sbr.rel (%p603) target = $region48
      $region47: #{transformer_forward.10} parent=43 // pred_region
        %p606 = scmp.lt.s32.totalorder %s16, 1
        %s607 = scalar_select %p606, %s16, 1
        %s608 = smul.addr %s607, 8
        %s609 = scalar_lea.vmem %s4, %s608
      $region48: #{transformer_forward.10} parent=43 // pred_fallthru
        _
    $region44: #{transformer_forward.10} parent=5 // pred_fallthru
      _
  $region6: #{transformer_forward.10} parent=0 // loop_footer
    %s14 = sadd.s32 1, %s10
  $region7: #{transformer_forward.10} parent=0 // loop_footer_branch
    %9 = sbr.rel target = $region3
  $region8: #{transformer_forward.10} parent=0 // loop_exit
    _

// kernel: transformer_forward.12
$region0: #{transformer_forward.12}
  #allocation0 [shape = 'u32[]', space=smem, size = 0x4, offset = 0x4, fixed_abs, tag = 'smem constant byte address 0x4 - core index']
  #allocation1 [shape = 'u32[72,128]{1,0:T(1,128)}', space=vmem, size = 0x9000, scoped, tag = 'internal scratch']
  #allocation2 [shape = 'f32[16,32]{1,0:T(8,128)}', space=vmem, size = 0x2000, scoped, tag = 'scratch operand']
  %s0 = inlined_call_operand.vmem [shape: f32[16,64], index: 0, kind: input, shape index: {}]
  %s1 = inlined_call_operand.vmem [shape: f32[64,32], index: 1, kind: input, shape index: {}]
  %s2 = inlined_call_operand.vmem [shape: f32[1,32], index: 2, kind: input, shape index: {}]
  %s3 = inlined_call_operand.vmem [shape: f32[16,32], index: 3, kind: input, shape index: {}]
  %s4 = inlined_call_operand.vmem [shape: f32[16,32], index: 4, kind: output, shape index: {}]
  %s5 = sld [smem:[#allocation0]]
  $region34: #{transformer_forward.12} parent=0
    _
  %s7 = ssub.s32 1, %s5
  %s8 = scalar_select 0, %s7, %s5
  // Predicated region
  $region2: #{transformer_forward.12} parent=0 // pred_check
    _
  $region3: #{transformer_forward.12} parent=0 // pred_check_branch
    %10 = sbr.rel (0) target = $region5
  $region4: #{transformer_forward.12} parent=0 // pred_region
    _
  $region5: #{transformer_forward.12} parent=0 // pred_fallthru
    _
  // Predicated region
  $region6: #{transformer_forward.12} parent=0 // pred_check
    _
  $region7: #{transformer_forward.12} parent=0 // pred_check_branch
    %12 = sbr.rel (0) target = $region9
  $region8: #{transformer_forward.12} parent=0 // pred_region
    _
  $region9: #{transformer_forward.12} parent=0 // pred_fallthru
    _
  // Predicated region
  $region10: #{transformer_forward.12} parent=0 // pred_check
    _
  $region11: #{transformer_forward.12} parent=0 // pred_check_branch
    %14 = sbr.rel (0) target = $region13
  $region12: #{transformer_forward.12} parent=0 // pred_region
    _
  $region13: #{transformer_forward.12} parent=0 // pred_fallthru
    _
  // Predicated region
  $region14: #{transformer_forward.12} parent=0 // pred_check
    _
  $region15: #{transformer_forward.12} parent=0 // pred_check_branch
    %16 = sbr.rel (0) target = $region17
  $region16: #{transformer_forward.12} parent=0 // pred_region
    _
  $region17: #{transformer_forward.12} parent=0 // pred_fallthru
    _
  %p17 = scmp.eq.s32.totalorder 0, 0
  // Predicated region
  $region18: #{transformer_forward.12} parent=0 // pred_check
    %p18 = pneg %p17
  $region19: #{transformer_forward.12} parent=0 // pred_check_branch
    %20 = sbr.rel (%p18) target = $region21
  $region20: #{transformer_forward.12} parent=0 // pred_region
    %vm21 = vcmask 261120
    %22 = vst.msk [vmem:[#allocation2] sm:$0xff] %vm21, 0.0
    %23 = vst.msk [vmem:[#allocation2 + $0x8] sm:$0xff] %vm21, 0.0
  $region21: #{transformer_forward.12} parent=0 // pred_fallthru
    _
  %v24 = vld [vmem:[#allocation2] sm:$0xff]
  %v25 = vld [vmem:[#allocation2 + $0x8] sm:$0xff]
  %v26 = vld [vmem:[%s0] sm:$0xff]
  %v27 = vld [vmem:[%s0 + $0x8] sm:$0xff]
  %v28 = vld [vmem:[%s1] sm:$0xff]
  %v29 = vld [vmem:[%s1 + $0x8] sm:$0xff]
  %v30 = vld [vmem:[%s1 + $0x10] sm:$0xff]
  %v31 = vld [vmem:[%s1 + $0x18] sm:$0xff]
  %v32 = vld [vmem:[%s1 + $0x20] sm:$0xff]
  %v33 = vld [vmem:[%s1 + $0x28] sm:$0xff]
  %v34 = vld [vmem:[%s1 + $0x30] sm:$0xff]
  %v35 = vld [vmem:[%s1 + $0x38] sm:$0xff]
  %vm36 = vcmask 523264
  %v38 = vsel %vm36, %v26, 0
  %v41 = vsel %vm36, %v27, 0
  %43 = vmatpush.msra.mxu0 0.0
  %44 = vmatpush.msra.mxu0 0.0
  %45 = vmatpush.msra.mxu0 0.0
  %46 = vmatpush.msra.mxu0 0.0
  %47 = vmatpush.msra.mxu0 0.0
  %48 = vmatpush.msra.mxu0 0.0
  %49 = vmatpush.msra.mxu0 0.0
  %50 = vmatpush.msra.mxu0 0.0
  %51 = vmatpush.msra.mxu0 %v35
  %52 = vmatpush.msra.mxu0 %v34
  %53 = vmatpush.msra.mxu0 %v33
  %54 = vmatpush.msra.mxu0 %v32
  %55 = vmatpush.msra.mxu0 %v31
  %56 = vmatpush.msra.mxu0 %v30
  %57 = vmatpush.msra.mxu0 %v29
  %58 = vmatpush.msra.mxu0 %v28
  %59 = vmatmul.f32.gmra.mxu0 %v38
  %v60 = vpop.f32.mrf.mxu0
  %v61 = vadd.f32 0.0, %v60
  %62 = vmatmul.f32.gmra.mxu0 %v41
  %v63 = vpop.f32.mrf.mxu0
  %v64 = vadd.f32 0.0, %v63
  %65 = vdwg.mxu0
  %v66 = vadd.f32 %v24, %v61
  %v67 = vadd.f32 %v25, %v64
  %vm68 = vcmask 261120
  %69 = vst.msk [vmem:[#allocation2] sm:$0xff] %vm68, %v66
  %70 = vst.msk [vmem:[#allocation2 + $0x8] sm:$0xff] %vm68, %v67
  // Predicated region
  $region22: #{transformer_forward.12} parent=0 // pred_check
    %p71 = pneg %p17
  $region23: #{transformer_forward.12} parent=0 // pred_check_branch
    %73 = sbr.rel (%p71) target = $region25
  $region24: #{transformer_forward.12} parent=0 // pred_region
    %v74 = vld [vmem:[#allocation2] sm:$0xff]
    %v75 = vld [vmem:[#allocation2 + $0x8] sm:$0xff]
    %v76 = vld [vmem:[%s2] sm:$0x1]
    %v78 = vperm.slane %v76, 0
    %v80 = vadd.f32 %v74, %v78
    %v81 = vadd.f32 %v75, %v78
    %v82 = vld [vmem:[%s3] sm:$0xff]
    %v83 = vld [vmem:[%s3 + $0x8] sm:$0xff]
    %v84 = vadd.f32 %v80, %v82
    %v85 = vadd.f32 %v81, %v83
    %86 = vst.msk [vmem:[%s4] sm:$0xff] %vm68, %v84
    %87 = vst.msk [vmem:[%s4 + $0x8] sm:$0xff] %vm68, %v85
  $region25: #{transformer_forward.12} parent=0 // pred_fallthru
    _
  // Predicated region
  $region26: #{transformer_forward.12} parent=0 // pred_check
    _
  $region27: #{transformer_forward.12} parent=0 // pred_check_branch
    %89 = sbr.rel (0) target = $region29
  $region28: #{transformer_forward.12} parent=0 // pred_region
    _
  $region29: #{transformer_forward.12} parent=0 // pred_fallthru
    _
  // Predicated region
  $region30: #{transformer_forward.12} parent=0 // pred_check
    _
  $region31: #{transformer_forward.12} parent=0 // pred_check_branch
    %91 = sbr.rel (0) target = $region33
  $region32: #{transformer_forward.12} parent=0 // pred_region
    _
  $region33: #{transformer_forward.12} parent=0 // pred_fallthru
    _

// kernel: transformer_forward.17
$region0: #{transformer_forward.17}
  #allocation0 [shape = 'u32[]', space=smem, size = 0x4, offset = 0x4, fixed_abs, tag = 'smem constant byte address 0x4 - core index']
  #allocation1 [shape = 'u32[72,128]{1,0:T(1,128)}', space=vmem, size = 0x9000, scoped, tag = 'internal scratch']
  #allocation2 [shape = 'f32[16,64]{1,0:T(8,128)}', space=vmem, size = 0x2000, scoped, tag = 'scratch operand']
  %s0 = inlined_call_operand.vmem [shape: f32[16,32], index: 0, kind: input, shape index: {}]
  %s1 = inlined_call_operand.vmem [shape: f32[32,64], index: 1, kind: input, shape index: {}]
  %s2 = inlined_call_operand.hbm [shape: f32[16,64], index: 2, kind: output, shape index: {}]
  %s3 = sld [smem:[#allocation0]]
  $region26: #{transformer_forward.17} parent=0
    _
  %s5 = ssub.s32 1, %s3
  %s6 = scalar_select 0, %s5, %s3
  $region1: #{transformer_forward.17} parent=0
    #allocation3 [shape = 'u8[8192]{0}', space=vmem, size = 0x2000, scoped, tag = 'output window, operand 0, single buffered']
    #allocation4 [shape = 's32[1]{0}', space=sflag, size = 0x4, scoped, tag = 'scoped memory for transformer_forward.17']
    %7 = vsyncpa [#allocation4], 0
    // Predicated region
    $region2: #{transformer_forward.17} parent=1 // pred_check
      _
    $region3: #{transformer_forward.17} parent=1 // pred_check_branch
      %9 = sbr.rel (0) target = $region5
    $region4: #{transformer_forward.17} parent=1 // pred_region
      _
    $region5: #{transformer_forward.17} parent=1 // pred_fallthru
      _
    // Predicated region
    $region6: #{transformer_forward.17} parent=1 // pred_check
      _
    $region7: #{transformer_forward.17} parent=1 // pred_check_branch
      %11 = sbr.rel (0) target = $region9
    $region8: #{transformer_forward.17} parent=1 // pred_region
      _
    $region9: #{transformer_forward.17} parent=1 // pred_fallthru
      _
    %p12 = scmp.eq.s32.totalorder 0, 0
    // Predicated region
    $region10: #{transformer_forward.17} parent=1 // pred_check
      %p13 = pneg %p12
    $region11: #{transformer_forward.17} parent=1 // pred_check_branch
      %15 = sbr.rel (%p13) target = $region13
    $region12: #{transformer_forward.17} parent=1 // pred_region
      %vm16 = vcmask 523264
      %17 = vst.msk [vmem:[#allocation2] sm:$0xff] %vm16, 0.0
      %18 = vst.msk [vmem:[#allocation2 + $0x8] sm:$0xff] %vm16, 0.0
    $region13: #{transformer_forward.17} parent=1 // pred_fallthru
      _
    %v19 = vld [vmem:[#allocation2] sm:$0xff]
    %v20 = vld [vmem:[#allocation2 + $0x8] sm:$0xff]
    %v21 = vld [vmem:[%s0] sm:$0xff]
    %v22 = vld [vmem:[%s0 + $0x8] sm:$0xff]
    %v23 = vld [vmem:[%s1] sm:$0xff]
    %v24 = vld [vmem:[%s1 + $0x8] sm:$0xff]
    %v25 = vld [vmem:[%s1 + $0x10] sm:$0xff]
    %v26 = vld [vmem:[%s1 + $0x18] sm:$0xff]
    %vm27 = vcmask 261120
    %v29 = vsel %vm27, %v21, 0
    %v32 = vsel %vm27, %v22, 0
    %34 = vmatpush.msra.mxu0 0.0
    %35 = vmatpush.msra.mxu0 0.0
    %36 = vmatpush.msra.mxu0 0.0
    %37 = vmatpush.msra.mxu0 0.0
    %38 = vmatpush.msra.mxu0 0.0
    %39 = vmatpush.msra.mxu0 0.0
    %40 = vmatpush.msra.mxu0 0.0
    %41 = vmatpush.msra.mxu0 0.0
    %42 = vmatpush.msra.mxu0 0.0
    %43 = vmatpush.msra.mxu0 0.0
    %44 = vmatpush.msra.mxu0 0.0
    %45 = vmatpush.msra.mxu0 0.0
    %46 = vmatpush.msra.mxu0 %v26
    %47 = vmatpush.msra.mxu0 %v25
    %48 = vmatpush.msra.mxu0 %v24
    %49 = vmatpush.msra.mxu0 %v23
    %50 = vmatmul.f32.gmra.mxu0 %v29
    %v51 = vpop.f32.mrf.mxu0
    %v52 = vadd.f32 0.0, %v51
    %53 = vmatmul.f32.gmra.mxu0 %v32
    %v54 = vpop.f32.mrf.mxu0
    %v55 = vadd.f32 0.0, %v54
    %56 = vdwg.mxu0
    %v57 = vadd.f32 %v19, %v52
    %v58 = vadd.f32 %v20, %v55
    %vm59 = vcmask 523264
    %60 = vst.msk [vmem:[#allocation2] sm:$0xff] %vm59, %v57
    %61 = vst.msk [vmem:[#allocation2 + $0x8] sm:$0xff] %vm59, %v58
    // Predicated region
    $region14: #{transformer_forward.17} parent=1 // pred_check
      %p62 = pneg %p12
    $region15: #{transformer_forward.17} parent=1 // pred_check_branch
      %64 = sbr.rel (%p62) target = $region17
    $region16: #{transformer_forward.17} parent=1 // pred_region
      %v65 = vld [vmem:[#allocation2] sm:$0xff]
      %v66 = vld [vmem:[#allocation2 + $0x8] sm:$0xff]
      %67 = vst.msk [vmem:[#allocation3] sm:$0xff] %vm59, %v65
      %68 = vst.msk [vmem:[#allocation3 + $0x8] sm:$0xff] %vm59, %v66
    $region17: #{transformer_forward.17} parent=1 // pred_fallthru
      _
    // Predicated region
    $region18: #{transformer_forward.17} parent=1 // pred_check
      _
    $region19: #{transformer_forward.17} parent=1 // pred_check_branch
      %70 = sbr.rel (0) target = $region21
    $region20: #{transformer_forward.17} parent=1 // pred_region
      %72 = vsyncadd [#allocation4], 0
      %s73 = sshll.u32 [#allocation3], 4
      %s74 = int_to_ptr.vmem [resolvable:$true] %s73
      %s75 = sshll.u32 %s2, 4
      %s76 = int_to_ptr.hbm [resolvable:$true] %s75
      %81 = dma.vmem_to_hbm [thread:$0]  %s74, 256, %s76, [#allocation4], 128, 128, 8
    $region21: #{transformer_forward.17} parent=1 // pred_fallthru
      _
    // Predicated region
    $region22: #{transformer_forward.17} parent=1 // pred_check
      _
    $region23: #{transformer_forward.17} parent=1 // pred_check_branch
      %83 = sbr.rel (0) target = $region25
    $region24: #{transformer_forward.17} parent=1 // pred_region
      %85 = dma.done [#allocation4], 256
    $region25: #{transformer_forward.17} parent=1 // pred_fallthru
      _
    %86 = vsyncpa [#allocation4], 1

</llo_original>
